<compile_context>
chip_gen: v7x
topology: tpu7x:2x2x1
jax: 0.10.0
libtpu: 0.0.40
codegen_flags: <defaults>
</compile_context>

<pallas_src>
import jax
import jax.numpy as jnp
from jax import lax
from jax.experimental import pallas as pl
from jax.experimental.pallas import tpu as pltpu

_EPS = 1e-5  # PyTorch nn.LayerNorm default eps


def _swish_f32(v):
    return v * jax.nn.sigmoid(v)


def _layernorm_f32(v, gamma, beta):
    mu = jnp.mean(v, axis=-1, keepdims=True)
    var = jnp.mean((v - mu) ** 2, axis=-1, keepdims=True)  # biased variance (PyTorch)
    return (v - mu) * lax.rsqrt(var + _EPS) * gamma + beta


def _bottleneck_kernel(
    x_ref, t_ref, c_ref,
    g_in_ref, be_in_ref,          # LayerNorm(input_dim) params, f32
    w1_ref, b1_ref,               # fused [w_in; w_t; w_c]  -> (D+2H, H) bf16, summed bias f32
    g_h_ref, be_h_ref,            # LayerNorm(hidden_dim) params, f32
    w2_ref, b2_ref,               # fused [w_out; w_sc]     -> (H+D, D)  bf16, summed bias f32
    o_ref,
):
    x = x_ref[...].astype(jnp.float32)

    # Elementwise path in f32 (LayerNorm stats, Swish).
    a_in = _swish_f32(_layernorm_f32(x, g_in_ref[...], be_in_ref[...]))
    t_s = _swish_f32(t_ref[...].astype(jnp.float32))
    c_s = _swish_f32(c_ref[...].astype(jnp.float32))

    # Matmul 1: blcok_in + temb_proj + cond_proj fused (K = D + 2H).
    a1 = jnp.concatenate([a_in, t_s, c_s], axis=-1).astype(jnp.bfloat16)
    h = jnp.dot(a1, w1_ref[...], preferred_element_type=jnp.float32) + b1_ref[...]

    # Matmul 2: blcok_out (LN -> Swish -> Dropout(identity) -> Linear) + short_cut fused.
    h_s = _swish_f32(_layernorm_f32(h, g_h_ref[...], be_h_ref[...]))
    a2 = jnp.concatenate([h_s, x], axis=-1).astype(jnp.bfloat16)
    out = jnp.dot(a2, w2_ref[...], preferred_element_type=jnp.float32) + b2_ref[...]

    o_ref[...] = out.astype(o_ref.dtype)


def bottleneck_forward(x, t, cond, params, *, block_rows=128):
    """x: [B, D], t: [B, H], cond: [B, H] -> [B, D]  (D == input_dim == output_dim)."""
    (g_in, be_in, w_in, b_in, w_t, b_t, w_c, b_c,
     g_h, be_h, w_out, b_out, w_sc, b_sc) = params

    B, D = x.shape
    H = w_in.shape[1]
    assert t.shape == (B, H) and cond.shape == (B, H)
    assert w_sc.shape == (D, D), "module's residual requires input_dim == output_dim"

    # ---- wrapper-side weight fusion / dtype prep (done once, outside the grid) ----
    w1 = jnp.concatenate([w_in, w_t, w_c], axis=0).astype(jnp.bfloat16)     # (D+2H, H)
    b1 = (b_in + b_t + b_c).astype(jnp.float32)                             # (1, H)
    w2 = jnp.concatenate([w_out, w_sc], axis=0).astype(jnp.bfloat16)        # (H+D, D)
    b2 = (b_out + b_sc).astype(jnp.float32)                                 # (1, D)

    # ---- batch tiling: tile rows divisible by 8 (sublane), pad batch to fit ----
    b8 = ((B + 7) // 8) * 8
    tb = min(block_rows, b8)
    tb = ((tb + 7) // 8) * 8
    n_tiles = (b8 + tb - 1) // tb
    b_pad = n_tiles * tb
    if b_pad != B:
        pad = b_pad - B
        x_p = jnp.pad(x, ((0, pad), (0, 0)))
        t_p = jnp.pad(t, ((0, pad), (0, 0)))
        c_p = jnp.pad(cond, ((0, pad), (0, 0)))
    else:
        x_p, t_p, c_p = x, t, cond

    k1 = D + 2 * H
    k2 = H + D
    itemsize = x.dtype.itemsize

    # ---- VMEM budget: resident bf16 weights + double-buffered activation tiles ----
    weight_bytes = (k1 * H + k2 * D) * 2
    bias_bytes = (H + D + 2 * D + 2 * H) * 4
    act_tile_bytes = tb * (D + 2 * H + D) * itemsize              # x, t, c, out tiles
    scratch_bytes = tb * (k1 + k2 + 2 * H + 2 * D) * 4            # in-kernel f32 temporaries
    vmem_limit = int(2 * (weight_bytes + bias_bytes) + 2 * act_tile_bytes + scratch_bytes)
    vmem_limit = max(vmem_limit, 4 << 20)
    vmem_limit = min(vmem_limit, 48 << 20)                        # stay under v7x 64 MiB VMEM

    # ---- advisory cost for XLA scheduling around the custom call ----
    flops = 2 * b_pad * (k1 * H + k2 * D)
    transcendentals = b_pad * (D + 2 * H + H)                     # sigmoids at the Swish sites
    bytes_accessed = (x_p.size + t_p.size + c_p.size + b_pad * D) * itemsize \
        + weight_bytes + bias_bytes
    cost = pl.CostEstimate(flops=flops, transcendentals=transcendentals,
                           bytes_accessed=bytes_accessed)

    def act_spec(cols):
        return pl.BlockSpec((tb, cols), lambda i: (i, 0))

    def res_spec(arr):   # resident across the whole grid (constant block index)
        return pl.BlockSpec(arr.shape, lambda i: (0, 0))

    out = pl.pallas_call(
        _bottleneck_kernel,
        out_shape=jax.ShapeDtypeStruct((b_pad, D), x.dtype),
        grid=(n_tiles,),
        in_specs=[
            act_spec(D), act_spec(H), act_spec(H),
            res_spec(g_in), res_spec(be_in),
            res_spec(w1), res_spec(b1),
            res_spec(g_h), res_spec(be_h),
            res_spec(w2), res_spec(b2),
        ],
        out_specs=act_spec(D),
        compiler_params=pltpu.CompilerParams(
            dimension_semantics=("parallel",),   # shard batch tiles across TCs
            vmem_limit_bytes=vmem_limit,
        ),
        cost_estimate=cost,
    )(x_p, t_p, c_p, g_in, be_in, w1, b1, g_h, be_h, w2, b2)

    return out[:B] if b_pad != B else out


def init_params(key, input_dim, hidden_dim, output_dim):
    """Deterministic synthetic init. Linear weights stored as [in, out], f32."""
    ks = jax.random.split(key, 8)

    def lin(k, fan_in, fan_out):
        bound = 1.0 / jnp.sqrt(fan_in)
        kw, kb = jax.random.split(k)
        w = jax.random.uniform(kw, (fan_in, fan_out), jnp.float32, -bound, bound)
        b = jax.random.uniform(kb, (1, fan_out), jnp.float32, -bound, bound)
        return w, b

    g_in = jnp.ones((1, input_dim), jnp.float32)      # LayerNorm defaults
    be_in = jnp.zeros((1, input_dim), jnp.float32)
    w_in, b_in = lin(ks[0], input_dim, hidden_dim)
    w_t, b_t = lin(ks[1], hidden_dim, hidden_dim)
    w_c, b_c = lin(ks[2], hidden_dim, hidden_dim)
    g_h = jnp.ones((1, hidden_dim), jnp.float32)
    be_h = jnp.zeros((1, hidden_dim), jnp.float32)
    w_out, b_out = lin(ks[3], hidden_dim, output_dim)
    w_sc, b_sc = lin(ks[4], output_dim, output_dim)

    return (g_in, be_in, w_in, b_in,
            w_t, b_t,
            w_c, b_c,
            g_h, be_h, w_out, b_out,
            w_sc, b_sc)


def reference_forward(x, t, cond, params):
    """Pure-JAX reference with the same bf16-operand / f32-accumulate matmul numerics."""
    (g_in, be_in, w_in, b_in, w_t, b_t, w_c, b_c,
     g_h, be_h, w_out, b_out, w_sc, b_sc) = params

    def ln(v, g, b):
        mu = jnp.mean(v, -1, keepdims=True)
        var = jnp.mean((v - mu) ** 2, -1, keepdims=True)
        return (v - mu) / jnp.sqrt(var + _EPS) * g + b

    def sw(v):
        return v * jax.nn.sigmoid(v)

    def mm(a, w):
        return jnp.dot(a.astype(jnp.bfloat16), w.astype(jnp.bfloat16),
                       preferred_element_type=jnp.float32)

    h = mm(sw(ln(x, g_in, be_in)), w_in) + b_in
    h = h + mm(sw(t), w_t) + b_t
    h = h + mm(sw(cond), w_c) + b_c
    h = mm(sw(ln(h, g_h, be_h)), w_out) + b_out
    return h + mm(x, w_sc) + b_sc


if __name__ == "__main__":
    # Small, lane-dense dims; batch chosen so the grid (2 tiles) and the
    # row-padding path are both exercised.
    B, input_dim, hidden_dim, output_dim = 48, 128, 256, 128

    key = jax.random.PRNGKey(0)
    kx, kt, kc, kp = jax.random.split(key, 4)
    x = jax.random.normal(kx, (B, input_dim), jnp.float32)
    t = jax.random.normal(kt, (B, hidden_dim), jnp.float32)
    cond = jax.random.normal(kc, (B, hidden_dim), jnp.float32)
    params = init_params(kp, input_dim, hidden_dim, output_dim)

    out = jax.block_until_ready(bottleneck_forward(x, t, cond, params, block_rows=32))
    ref = jax.block_until_ready(reference_forward(x, t, cond, params))

    assert out.shape == (B, output_dim)
    assert jnp.allclose(out, ref, atol=1e-2, rtol=1e-2), \
        float(jnp.max(jnp.abs(out - ref)))
    print("KERNEL_OK")
</pallas_src>

<mosaic_0001>
module attributes {stable_mosaic.version = 11 : i64} {
  func.func @_bottleneck_kernel(%arg0: i32, %arg1: memref<32x128xf32, #tpu.memory_space<vmem>>, %arg2: memref<32x256xf32, #tpu.memory_space<vmem>>, %arg3: memref<32x256xf32, #tpu.memory_space<vmem>>, %arg4: memref<1x128xf32, #tpu.memory_space<vmem>>, %arg5: memref<1x128xf32, #tpu.memory_space<vmem>>, %arg6: memref<640x256xbf16, #tpu.memory_space<vmem>>, %arg7: memref<1x256xf32, #tpu.memory_space<vmem>>, %arg8: memref<1x256xf32, #tpu.memory_space<vmem>>, %arg9: memref<1x256xf32, #tpu.memory_space<vmem>>, %arg10: memref<384x128xbf16, #tpu.memory_space<vmem>>, %arg11: memref<1x128xf32, #tpu.memory_space<vmem>>, %arg12: memref<32x128xf32, #tpu.memory_space<vmem>>) attributes {dimension_semantics = [#tpu.dimension_semantics<parallel>], iteration_bounds = array<i64: 2>, scalar_prefetch = 0 : i64, scratch_operands = 0 : i64, tpu.core_type = #tpu.core_type<tc>, window_params = [{transform_indices = @transform_0, window_bounds = array<i64: 32, 128>}, {transform_indices = @transform_1, window_bounds = array<i64: 32, 256>}, {transform_indices = @transform_2, window_bounds = array<i64: 32, 256>}, {pipeline_mode = #tpu.pipeline_mode<synchronous>, transform_indices = @transform_3, window_bounds = array<i64: 1, 128>}, {pipeline_mode = #tpu.pipeline_mode<synchronous>, transform_indices = @transform_4, window_bounds = array<i64: 1, 128>}, {pipeline_mode = #tpu.pipeline_mode<synchronous>, transform_indices = @transform_5, window_bounds = array<i64: 640, 256>}, {pipeline_mode = #tpu.pipeline_mode<synchronous>, transform_indices = @transform_6, window_bounds = array<i64: 1, 256>}, {pipeline_mode = #tpu.pipeline_mode<synchronous>, transform_indices = @transform_7, window_bounds = array<i64: 1, 256>}, {pipeline_mode = #tpu.pipeline_mode<synchronous>, transform_indices = @transform_8, window_bounds = array<i64: 1, 256>}, {pipeline_mode = #tpu.pipeline_mode<synchronous>, transform_indices = @transform_9, window_bounds = array<i64: 384, 128>}, {pipeline_mode = #tpu.pipeline_mode<synchronous>, transform_indices = @transform_10, window_bounds = array<i64: 1, 128>}, {transform_indices = @transform_11, window_bounds = array<i64: 32, 128>}]} {
    %c0 = arith.constant 0 : index
    %c0_0 = arith.constant 0 : index
    %0 = vector.load %arg1[%c0, %c0_0] : memref<32x128xf32, #tpu.memory_space<vmem>>, vector<32x128xf32>
    %c0_1 = arith.constant 0 : index
    %c0_2 = arith.constant 0 : index
    %1 = vector.load %arg4[%c0_1, %c0_2] : memref<1x128xf32, #tpu.memory_space<vmem>>, vector<1x128xf32>
    %c0_3 = arith.constant 0 : index
    %c0_4 = arith.constant 0 : index
    %2 = vector.load %arg5[%c0_3, %c0_4] : memref<1x128xf32, #tpu.memory_space<vmem>>, vector<1x128xf32>
    %cst = arith.constant dense<0.000000e+00> : vector<32xf32>
    %3 = vector.multi_reduction <add>, %0, %cst [1] : vector<32x128xf32> to vector<32xf32>
    %4 = vector.shape_cast %3 : vector<32xf32> to vector<32x1xf32>
    %cst_5 = arith.constant 1.280000e+02 : f32
    %5 = vector.broadcast %cst_5 : f32 to vector<32x1xf32>
    %6 = arith.divf %4, %5 : vector<32x1xf32>
    %7 = vector.broadcast %6 : vector<32x1xf32> to vector<32x128xf32>
    %8 = arith.subf %0, %7 : vector<32x128xf32>
    %9 = arith.mulf %8, %8 : vector<32x128xf32>
    %cst_6 = arith.constant dense<0.000000e+00> : vector<32xf32>
    %10 = vector.multi_reduction <add>, %9, %cst_6 [1] : vector<32x128xf32> to vector<32xf32>
    %11 = vector.shape_cast %10 : vector<32xf32> to vector<32x1xf32>
    %cst_7 = arith.constant 1.280000e+02 : f32
    %12 = vector.broadcast %cst_7 : f32 to vector<32x1xf32>
    %13 = arith.divf %11, %12 : vector<32x1xf32>
    %14 = vector.broadcast %6 : vector<32x1xf32> to vector<32x128xf32>
    %15 = arith.subf %0, %14 : vector<32x128xf32>
    %cst_8 = arith.constant 9.99999974E-6 : f32
    %16 = vector.broadcast %cst_8 : f32 to vector<32x1xf32>
    %17 = arith.addf %13, %16 : vector<32x1xf32>
    %18 = math.rsqrt %17 : vector<32x1xf32>
    %19 = vector.broadcast %18 : vector<32x1xf32> to vector<32x128xf32>
    %20 = arith.mulf %15, %19 : vector<32x128xf32>
    %21 = vector.broadcast %1 : vector<1x128xf32> to vector<32x128xf32>
    %22 = arith.mulf %20, %21 : vector<32x128xf32>
    %23 = vector.broadcast %2 : vector<1x128xf32> to vector<32x128xf32>
    %24 = arith.addf %22, %23 : vector<32x128xf32>
    %25 = arith.negf %24 : vector<32x128xf32>
    %26 = math.exp %25 : vector<32x128xf32>
    %cst_9 = arith.constant 1.000000e+00 : f32
    %27 = vector.broadcast %cst_9 : f32 to vector<32x128xf32>
    %28 = arith.addf %27, %26 : vector<32x128xf32>
    %29 = arith.divf %27, %28 : vector<32x128xf32>
    %30 = arith.mulf %24, %29 : vector<32x128xf32>
    %c0_10 = arith.constant 0 : index
    %c0_11 = arith.constant 0 : index
    %31 = vector.load %arg2[%c0_10, %c0_11] : memref<32x256xf32, #tpu.memory_space<vmem>>, vector<32x256xf32>
    %32 = arith.negf %31 : vector<32x256xf32>
    %33 = math.exp %32 : vector<32x256xf32>
    %cst_12 = arith.constant 1.000000e+00 : f32
    %34 = vector.broadcast %cst_12 : f32 to vector<32x256xf32>
    %35 = arith.addf %34, %33 : vector<32x256xf32>
    %36 = arith.divf %34, %35 : vector<32x256xf32>
    %37 = arith.mulf %31, %36 : vector<32x256xf32>
    %c0_13 = arith.constant 0 : index
    %c0_14 = arith.constant 0 : index
    %38 = vector.load %arg3[%c0_13, %c0_14] : memref<32x256xf32, #tpu.memory_space<vmem>>, vector<32x256xf32>
    %39 = arith.negf %38 : vector<32x256xf32>
    %40 = math.exp %39 : vector<32x256xf32>
    %cst_15 = arith.constant 1.000000e+00 : f32
    %41 = vector.broadcast %cst_15 : f32 to vector<32x256xf32>
    %42 = arith.addf %41, %40 : vector<32x256xf32>
    %43 = arith.divf %41, %42 : vector<32x256xf32>
    %44 = arith.mulf %38, %43 : vector<32x256xf32>
    %45 = tpu.concatenate %30, %37, %44 in 1 : vector<32x128xf32>, vector<32x256xf32>, vector<32x256xf32> -> vector<32x640xf32>
    %46 = arith.truncf %45 : vector<32x640xf32> to vector<32x640xbf16>
    %c0_16 = arith.constant 0 : index
    %c0_17 = arith.constant 0 : index
    %47 = vector.load %arg6[%c0_16, %c0_17] : memref<640x256xbf16, #tpu.memory_space<vmem>>, vector<640x256xbf16>
    %cst_18 = arith.constant dense<0.000000e+00> : vector<32x256xf32>
    %48 = tpu.matmul %46, %47, %cst_18 {dimension_numbers = #tpu.dot_dimension_numbers<[1], [0], [0], [1], [0, 0, 1, 1], [], []>} : vector<32x640xbf16>, vector<640x256xbf16>, vector<32x256xf32> -> vector<32x256xf32>
    %c0_19 = arith.constant 0 : index
    %c0_20 = arith.constant 0 : index
    %49 = vector.load %arg7[%c0_19, %c0_20] : memref<1x256xf32, #tpu.memory_space<vmem>>, vector<1x256xf32>
    %50 = vector.broadcast %49 : vector<1x256xf32> to vector<32x256xf32>
    %51 = arith.addf %48, %50 : vector<32x256xf32>
    %c0_21 = arith.constant 0 : index
    %c0_22 = arith.constant 0 : index
    %52 = vector.load %arg8[%c0_21, %c0_22] : memref<1x256xf32, #tpu.memory_space<vmem>>, vector<1x256xf32>
    %c0_23 = arith.constant 0 : index
    %c0_24 = arith.constant 0 : index
    %53 = vector.load %arg9[%c0_23, %c0_24] : memref<1x256xf32, #tpu.memory_space<vmem>>, vector<1x256xf32>
    %cst_25 = arith.constant dense<0.000000e+00> : vector<32xf32>
    %54 = vector.multi_reduction <add>, %51, %cst_25 [1] : vector<32x256xf32> to vector<32xf32>
    %55 = vector.shape_cast %54 : vector<32xf32> to vector<32x1xf32>
    %cst_26 = arith.constant 2.560000e+02 : f32
    %56 = vector.broadcast %cst_26 : f32 to vector<32x1xf32>
    %57 = arith.divf %55, %56 : vector<32x1xf32>
    %58 = vector.broadcast %57 : vector<32x1xf32> to vector<32x256xf32>
    %59 = arith.subf %51, %58 : vector<32x256xf32>
    %60 = arith.mulf %59, %59 : vector<32x256xf32>
    %cst_27 = arith.constant dense<0.000000e+00> : vector<32xf32>
    %61 = vector.multi_reduction <add>, %60, %cst_27 [1] : vector<32x256xf32> to vector<32xf32>
    %62 = vector.shape_cast %61 : vector<32xf32> to vector<32x1xf32>
    %cst_28 = arith.constant 2.560000e+02 : f32
    %63 = vector.broadcast %cst_28 : f32 to vector<32x1xf32>
    %64 = arith.divf %62, %63 : vector<32x1xf32>
    %65 = vector.broadcast %57 : vector<32x1xf32> to vector<32x256xf32>
    %66 = arith.subf %51, %65 : vector<32x256xf32>
    %cst_29 = arith.constant 9.99999974E-6 : f32
    %67 = vector.broadcast %cst_29 : f32 to vector<32x1xf32>
    %68 = arith.addf %64, %67 : vector<32x1xf32>
    %69 = math.rsqrt %68 : vector<32x1xf32>
    %70 = vector.broadcast %69 : vector<32x1xf32> to vector<32x256xf32>
    %71 = arith.mulf %66, %70 : vector<32x256xf32>
    %72 = vector.broadcast %52 : vector<1x256xf32> to vector<32x256xf32>
    %73 = arith.mulf %71, %72 : vector<32x256xf32>
    %74 = vector.broadcast %53 : vector<1x256xf32> to vector<32x256xf32>
    %75 = arith.addf %73, %74 : vector<32x256xf32>
    %76 = arith.negf %75 : vector<32x256xf32>
    %77 = math.exp %76 : vector<32x256xf32>
    %cst_30 = arith.constant 1.000000e+00 : f32
    %78 = vector.broadcast %cst_30 : f32 to vector<32x256xf32>
    %79 = arith.addf %78, %77 : vector<32x256xf32>
    %80 = arith.divf %78, %79 : vector<32x256xf32>
    %81 = arith.mulf %75, %80 : vector<32x256xf32>
    %82 = tpu.concatenate %81, %0 in 1 : vector<32x256xf32>, vector<32x128xf32> -> vector<32x384xf32>
    %83 = arith.truncf %82 : vector<32x384xf32> to vector<32x384xbf16>
    %c0_31 = arith.constant 0 : index
    %c0_32 = arith.constant 0 : index
    %84 = vector.load %arg10[%c0_31, %c0_32] : memref<384x128xbf16, #tpu.memory_space<vmem>>, vector<384x128xbf16>
    %cst_33 = arith.constant dense<0.000000e+00> : vector<32x128xf32>
    %85 = tpu.matmul %83, %84, %cst_33 {dimension_numbers = #tpu.dot_dimension_numbers<[1], [0], [0], [1], [0, 0, 1, 1], [], []>} : vector<32x384xbf16>, vector<384x128xbf16>, vector<32x128xf32> -> vector<32x128xf32>
    %c0_34 = arith.constant 0 : index
    %c0_35 = arith.constant 0 : index
    %86 = vector.load %arg11[%c0_34, %c0_35] : memref<1x128xf32, #tpu.memory_space<vmem>>, vector<1x128xf32>
    %87 = vector.broadcast %86 : vector<1x128xf32> to vector<32x128xf32>
    %88 = arith.addf %85, %87 : vector<32x128xf32>
    %c0_36 = arith.constant 0 : index
    %c0_37 = arith.constant 0 : index
    %89 = vector.load %arg12[%c0_36, %c0_37] : memref<32x128xf32, #tpu.memory_space<vmem>>, vector<32x128xf32>
    tpu.vector_store %arg12[%c0_36, %c0_37], %88 {strides = array<i32>} : memref<32x128xf32, #tpu.memory_space<vmem>>, vector<32x128xf32>,
    return
  }
  func.func @transform_0(%arg0: i32) -> (i32, i32) {
    %c0_i32 = arith.constant 0 : i32
    %c0_i32_0 = arith.constant 0 : i32
    return %arg0, %c0_i32 : i32, i32
  }
  func.func @transform_1(%arg0: i32) -> (i32, i32) {
    %c0_i32 = arith.constant 0 : i32
    %c0_i32_0 = arith.constant 0 : i32
    return %arg0, %c0_i32 : i32, i32
  }
  func.func @transform_2(%arg0: i32) -> (i32, i32) {
    %c0_i32 = arith.constant 0 : i32
    %c0_i32_0 = arith.constant 0 : i32
    return %arg0, %c0_i32 : i32, i32
  }
  func.func @transform_3(%arg0: i32) -> (i32, i32) {
    %c0_i32 = arith.constant 0 : i32
    %c0_i32_0 = arith.constant 0 : i32
    %c0_i32_1 = arith.constant 0 : i32
    return %c0_i32, %c0_i32_0 : i32, i32
  }
  func.func @transform_4(%arg0: i32) -> (i32, i32) {
    %c0_i32 = arith.constant 0 : i32
    %c0_i32_0 = arith.constant 0 : i32
    %c0_i32_1 = arith.constant 0 : i32
    return %c0_i32, %c0_i32_0 : i32, i32
  }
  func.func @transform_5(%arg0: i32) -> (i32, i32) {
    %c0_i32 = arith.constant 0 : i32
    %c0_i32_0 = arith.constant 0 : i32
    %c0_i32_1 = arith.constant 0 : i32
    return %c0_i32, %c0_i32_0 : i32, i32
  }
  func.func @transform_6(%arg0: i32) -> (i32, i32) {
    %c0_i32 = arith.constant 0 : i32
    %c0_i32_0 = arith.constant 0 : i32
    %c0_i32_1 = arith.constant 0 : i32
    return %c0_i32, %c0_i32_0 : i32, i32
  }
  func.func @transform_7(%arg0: i32) -> (i32, i32) {
    %c0_i32 = arith.constant 0 : i32
    %c0_i32_0 = arith.constant 0 : i32
    %c0_i32_1 = arith.constant 0 : i32
    return %c0_i32, %c0_i32_0 : i32, i32
  }
  func.func @transform_8(%arg0: i32) -> (i32, i32) {
    %c0_i32 = arith.constant 0 : i32
    %c0_i32_0 = arith.constant 0 : i32
    %c0_i32_1 = arith.constant 0 : i32
    return %c0_i32, %c0_i32_0 : i32, i32
  }
  func.func @transform_9(%arg0: i32) -> (i32, i32) {
    %c0_i32 = arith.constant 0 : i32
    %c0_i32_0 = arith.constant 0 : i32
    %c0_i32_1 = arith.constant 0 : i32
    return %c0_i32, %c0_i32_0 : i32, i32
  }
  func.func @transform_10(%arg0: i32) -> (i32, i32) {
    %c0_i32 = arith.constant 0 : i32
    %c0_i32_0 = arith.constant 0 : i32
    %c0_i32_1 = arith.constant 0 : i32
    return %c0_i32, %c0_i32_0 : i32, i32
  }
  func.func @transform_11(%arg0: i32) -> (i32, i32) {
    %c0_i32 = arith.constant 0 : i32
    %c0_i32_0 = arith.constant 0 : i32
    return %arg0, %c0_i32 : i32, i32
  }
}

</mosaic_0001>

<llo_original>
// kernel: tpu_custom_call.1
$region0: #{tpu_custom_call.1}
  #allocation0 [shape = 'u32[]', space=smem, size = 0x4, offset = 0x4, fixed_abs, tag = 'smem constant byte address 0x4 - core index']
  #allocation1 [shape = 'u32[144,128]{1,0:T(1,128)}', space=vmem, size = 0x12000, scoped, tag = 'internal scratch']
  %s0 = inlined_call_operand.hbm [shape: f32[64,128], index: 0, kind: input, shape index: {}]
  %s1 = inlined_call_operand.hbm [shape: f32[64,256], index: 1, kind: input, shape index: {}]
  %s2 = inlined_call_operand.hbm [shape: f32[64,256], index: 2, kind: input, shape index: {}]
  %s3 = inlined_call_operand.vmem [shape: f32[1,128], index: 3, kind: input, shape index: {}]
  %s4 = inlined_call_operand.vmem [shape: f32[1,128], index: 4, kind: input, shape index: {}]
  %s5 = inlined_call_operand.hbm [shape: bf16[640,256], index: 5, kind: input, shape index: {}]
  %s6 = inlined_call_operand.vmem [shape: f32[1,256], index: 6, kind: input, shape index: {}]
  %s7 = inlined_call_operand.vmem [shape: f32[1,256], index: 7, kind: input, shape index: {}]
  %s8 = inlined_call_operand.vmem [shape: f32[1,256], index: 8, kind: input, shape index: {}]
  %s9 = inlined_call_operand.hbm [shape: bf16[384,128], index: 9, kind: input, shape index: {}]
  %s10 = inlined_call_operand.vmem [shape: f32[1,128], index: 10, kind: input, shape index: {}]
  %s11 = inlined_call_operand.hbm [shape: f32[64,128], index: 11, kind: output, shape index: {}]
  %s12 = sld [smem:[#allocation0]]
  $region97: #{tpu_custom_call.1} parent=0
    _
  %s14 = ssub.s32 1, %s12
  %s15 = scalar_select 0, %s14, %s12
  $region1: #{tpu_custom_call.1} parent=0
    #allocation2 [shape = 'u8[32768]{0}', space=vmem, size = 0x8000, scoped, tag = 'input window, operand 0']
    #allocation3 [shape = 's32[2]{0}', space=sflag, size = 0x8, scoped, tag = 'scoped memory for tpu_custom_call.1']
    #allocation4 [shape = 's32[2]{0}', space=sflag, size = 0x8, scoped, tag = 'scoped memory for tpu_custom_call.1']
    #allocation5 [shape = 'u8[65536]{0}', space=vmem, size = 0x10000, scoped, tag = 'input window, operand 1']
    #allocation6 [shape = 's32[2]{0}', space=sflag, size = 0x8, scoped, tag = 'scoped memory for tpu_custom_call.1']
    #allocation7 [shape = 'u8[65536]{0}', space=vmem, size = 0x10000, scoped, tag = 'input window, operand 2']
    #allocation8 [shape = 'u8[327680]{0}', space=vmem, size = 0x50000, scoped, tag = 'input window, operand 5, single buffered']
    #allocation9 [shape = 's32[1]{0}', space=sflag, size = 0x4, scoped, tag = 'scoped memory for tpu_custom_call.1']
    #allocation10 [shape = 'u8[98304]{0}', space=vmem, size = 0x18000, scoped, tag = 'input window, operand 9, single buffered']
    #allocation11 [shape = 'u8[32768]{0}', space=vmem, size = 0x8000, scoped, tag = 'output window, operand 0']
    %16 = vsyncpa [#allocation3], 0
    %s17 = scalar_lea.sflag [#allocation3], 1
    %18 = vsyncpa %s17, 0
    %19 = vsyncpa [#allocation6], 0
    %s20 = scalar_lea.sflag [#allocation6], 1
    %21 = vsyncpa %s20, 0
    %22 = vsyncpa [#allocation9], 0
    %23 = vsyncpa [#allocation4], 0
    %s24 = scalar_lea.sflag [#allocation4], 1
    %25 = vsyncpa %s24, 0
    loop: start=0, step=1, limit=4
    $region2: #{tpu_custom_call.1} parent=1 // loop_pre_header
      _
    $region3: #{tpu_custom_call.1} parent=1 // loop_header
      %s27 = sphi 0, %s31
      %p28 = scmp.ge.s32.totalorder %s27, 4
      %s37 = sphi 0, %s39
      %s40 = sphi 0, %s37
      %s41 = sphi 0, %s40
      %s57 = sphi 0, %s41
      %s63 = sphi 0, %s65
      %s66 = sphi 0, %s63
      %s67 = sphi 0, %s66
      %s83 = sphi 0, %s67
      %s89 = sphi 0, %s91
      %s92 = sphi 0, %s89
      %s93 = sphi 0, %s92
      %s109 = sphi 0, %s93
      %s113 = sphi 0, %s113
      %s115 = sphi 0, %s113
      %s116 = sphi 0, %s115
      %s130 = sphi 0, %s116
      %s134 = sphi 0, %s134
      %s136 = sphi 0, %s134
      %s137 = sphi 0, %s136
      %s151 = sphi 0, %s137
      %s155 = sphi 0, %s155
      %s157 = sphi 0, %s155
      %s158 = sphi 0, %s157
      %s172 = sphi 0, %s158
      %s176 = sphi 0, %s176
      %s178 = sphi 0, %s176
      %s179 = sphi 0, %s178
      %s193 = sphi 0, %s179
      %s197 = sphi 0, %s197
      %s199 = sphi 0, %s197
      %s200 = sphi 0, %s199
      %s214 = sphi 0, %s200
      %s218 = sphi 0, %s218
      %s220 = sphi 0, %s218
      %s221 = sphi 0, %s220
      %s235 = sphi 0, %s221
      %s239 = sphi 0, %s239
      %s241 = sphi 0, %s239
      %s242 = sphi 0, %s241
      %s256 = sphi 0, %s242
      %s260 = sphi 0, %s260
      %s262 = sphi 0, %s260
      %s263 = sphi 0, %s262
      %s277 = sphi 0, %s263
      %s283 = sphi 0, %s285
      %s286 = sphi 0, %s283
      %s287 = sphi 0, %s286
      %s303 = sphi 0, %s287
    $region4: #{tpu_custom_call.1} parent=1 // loop_header_branch
      %30 = sbr.rel (%p28) target = $region8
    $region5: #{tpu_custom_call.1} parent=1 // loop_body
      %s32 = ssub.s32 %s27, 1
      %s33 = ssub.s32 %s27, 2
      %s34 = sadd.s32 %s27, 1
      %s35 = ssub.s32 %s27, %s34
      %p36 = scmp.eq.s32.totalorder %s35, 0
      %s38 = sadd.s32 %s37, 1
      %s39 = scalar_select %p36, %s37, %s38
      %p42 = pneg %p36
      %p43 = scmp.eq.s32.totalorder %s27, 1
      %p44 = por %p42, %p43
      %p45 = scmp.ne.s32.totalorder %s37, %s40
      %p46 = scmp.eq.s32.totalorder %s27, 0
      %p47 = por %p45, %p46
      %p48 = scmp.ne.s32.totalorder %s37, %s40
      %p49 = scmp.eq.s32.totalorder %s32, 1
      %p50 = por %p48, %p49
      %p51 = scmp.ne.s32.totalorder %s40, %s41
      %p52 = scmp.eq.s32.totalorder %s32, 0
      %p53 = por %p51, %p52
      %p54 = scmp.ne.s32.totalorder %s40, %s41
      %p55 = scmp.eq.s32.totalorder %s33, 1
      %p56 = por %p54, %p55
      %p58 = scmp.ne.s32.totalorder %s41, %s57
      %p59 = scmp.eq.s32.totalorder %s33, 0
      %p60 = por %p58, %p59
      %s61 = ssub.s32 %s27, %s34
      %p62 = scmp.eq.s32.totalorder %s61, 0
      %s64 = sadd.s32 %s63, 1
      %s65 = scalar_select %p62, %s63, %s64
      %p68 = pneg %p62
      %p69 = scmp.eq.s32.totalorder %s27, 1
      %p70 = por %p68, %p69
      %p71 = scmp.ne.s32.totalorder %s63, %s66
      %p72 = scmp.eq.s32.totalorder %s27, 0
      %p73 = por %p71, %p72
      %p74 = scmp.ne.s32.totalorder %s63, %s66
      %p75 = scmp.eq.s32.totalorder %s32, 1
      %p76 = por %p74, %p75
      %p77 = scmp.ne.s32.totalorder %s66, %s67
      %p78 = scmp.eq.s32.totalorder %s32, 0
      %p79 = por %p77, %p78
      %p80 = scmp.ne.s32.totalorder %s66, %s67
      %p81 = scmp.eq.s32.totalorder %s33, 1
      %p82 = por %p80, %p81
      %p84 = scmp.ne.s32.totalorder %s67, %s83
      %p85 = scmp.eq.s32.totalorder %s33, 0
      %p86 = por %p84, %p85
      %s87 = ssub.s32 %s27, %s34
      %p88 = scmp.eq.s32.totalorder %s87, 0
      %s90 = sadd.s32 %s89, 1
      %s91 = scalar_select %p88, %s89, %s90
      %p94 = pneg %p88
      %p95 = scmp.eq.s32.totalorder %s27, 1
      %p96 = por %p94, %p95
      %p97 = scmp.ne.s32.totalorder %s89, %s92
      %p98 = scmp.eq.s32.totalorder %s27, 0
      %p99 = por %p97, %p98
      %p100 = scmp.ne.s32.totalorder %s89, %s92
      %p101 = scmp.eq.s32.totalorder %s32, 1
      %p102 = por %p100, %p101
      %p103 = scmp.ne.s32.totalorder %s92, %s93
      %p104 = scmp.eq.s32.totalorder %s32, 0
      %p105 = por %p103, %p104
      %p106 = scmp.ne.s32.totalorder %s92, %s93
      %p107 = scmp.eq.s32.totalorder %s33, 1
      %p108 = por %p106, %p107
      %p110 = scmp.ne.s32.totalorder %s93, %s109
      %p111 = scmp.eq.s32.totalorder %s33, 0
      %p112 = por %p110, %p111
      %s114 = sadd.s32 %s113, 1
      %p117 = scmp.eq.s32.totalorder %s27, 1
      %p118 = scmp.ne.s32.totalorder %s113, %s115
      %p119 = scmp.eq.s32.totalorder %s27, 0
      %p120 = por %p118, %p119
      %p121 = scmp.ne.s32.totalorder %s113, %s115
      %p122 = scmp.eq.s32.totalorder %s32, 1
      %p123 = por %p121, %p122
      %p124 = scmp.ne.s32.totalorder %s115, %s116
      %p125 = scmp.eq.s32.totalorder %s32, 0
      %p126 = por %p124, %p125
      %p127 = scmp.ne.s32.totalorder %s115, %s116
      %p128 = scmp.eq.s32.totalorder %s33, 1
      %p129 = por %p127, %p128
      %p131 = scmp.ne.s32.totalorder %s116, %s130
      %p132 = scmp.eq.s32.totalorder %s33, 0
      %p133 = por %p131, %p132
      %s135 = sadd.s32 %s134, 1
      %p138 = scmp.eq.s32.totalorder %s27, 1
      %p139 = scmp.ne.s32.totalorder %s134, %s136
      %p140 = scmp.eq.s32.totalorder %s27, 0
      %p141 = por %p139, %p140
      %p142 = scmp.ne.s32.totalorder %s134, %s136
      %p143 = scmp.eq.s32.totalorder %s32, 1
      %p144 = por %p142, %p143
      %p145 = scmp.ne.s32.totalorder %s136, %s137
      %p146 = scmp.eq.s32.totalorder %s32, 0
      %p147 = por %p145, %p146
      %p148 = scmp.ne.s32.totalorder %s136, %s137
      %p149 = scmp.eq.s32.totalorder %s33, 1
      %p150 = por %p148, %p149
      %p152 = scmp.ne.s32.totalorder %s137, %s151
      %p153 = scmp.eq.s32.totalorder %s33, 0
      %p154 = por %p152, %p153
      %s156 = sadd.s32 %s155, 1
      %p159 = scmp.eq.s32.totalorder %s27, 1
      %p160 = scmp.ne.s32.totalorder %s155, %s157
      %p161 = scmp.eq.s32.totalorder %s27, 0
      %p162 = por %p160, %p161
      %p163 = scmp.ne.s32.totalorder %s155, %s157
      %p164 = scmp.eq.s32.totalorder %s32, 1
      %p165 = por %p163, %p164
      %p166 = scmp.ne.s32.totalorder %s157, %s158
      %p167 = scmp.eq.s32.totalorder %s32, 0
      %p168 = por %p166, %p167
      %p169 = scmp.ne.s32.totalorder %s157, %s158
      %p170 = scmp.eq.s32.totalorder %s33, 1
      %p171 = por %p169, %p170
      %p173 = scmp.ne.s32.totalorder %s158, %s172
      %p174 = scmp.eq.s32.totalorder %s33, 0
      %p175 = por %p173, %p174
      %s177 = sadd.s32 %s176, 1
      %p180 = scmp.eq.s32.totalorder %s27, 1
      %p181 = scmp.ne.s32.totalorder %s176, %s178
      %p182 = scmp.eq.s32.totalorder %s27, 0
      %p183 = por %p181, %p182
      %p184 = scmp.ne.s32.totalorder %s176, %s178
      %p185 = scmp.eq.s32.totalorder %s32, 1
      %p186 = por %p184, %p185
      %p187 = scmp.ne.s32.totalorder %s178, %s179
      %p188 = scmp.eq.s32.totalorder %s32, 0
      %p189 = por %p187, %p188
      %p190 = scmp.ne.s32.totalorder %s178, %s179
      %p191 = scmp.eq.s32.totalorder %s33, 1
      %p192 = por %p190, %p191
      %p194 = scmp.ne.s32.totalorder %s179, %s193
      %p195 = scmp.eq.s32.totalorder %s33, 0
      %p196 = por %p194, %p195
      %s198 = sadd.s32 %s197, 1
      %p201 = scmp.eq.s32.totalorder %s27, 1
      %p202 = scmp.ne.s32.totalorder %s197, %s199
      %p203 = scmp.eq.s32.totalorder %s27, 0
      %p204 = por %p202, %p203
      %p205 = scmp.ne.s32.totalorder %s197, %s199
      %p206 = scmp.eq.s32.totalorder %s32, 1
      %p207 = por %p205, %p206
      %p208 = scmp.ne.s32.totalorder %s199, %s200
      %p209 = scmp.eq.s32.totalorder %s32, 0
      %p210 = por %p208, %p209
      %p211 = scmp.ne.s32.totalorder %s199, %s200
      %p212 = scmp.eq.s32.totalorder %s33, 1
      %p213 = por %p211, %p212
      %p215 = scmp.ne.s32.totalorder %s200, %s214
      %p216 = scmp.eq.s32.totalorder %s33, 0
      %p217 = por %p215, %p216
      %s219 = sadd.s32 %s218, 1
      %p222 = scmp.eq.s32.totalorder %s27, 1
      %p223 = scmp.ne.s32.totalorder %s218, %s220
      %p224 = scmp.eq.s32.totalorder %s27, 0
      %p225 = por %p223, %p224
      %p226 = scmp.ne.s32.totalorder %s218, %s220
      %p227 = scmp.eq.s32.totalorder %s32, 1
      %p228 = por %p226, %p227
      %p229 = scmp.ne.s32.totalorder %s220, %s221
      %p230 = scmp.eq.s32.totalorder %s32, 0
      %p231 = por %p229, %p230
      %p232 = scmp.ne.s32.totalorder %s220, %s221
      %p233 = scmp.eq.s32.totalorder %s33, 1
      %p234 = por %p232, %p233
      %p236 = scmp.ne.s32.totalorder %s221, %s235
      %p237 = scmp.eq.s32.totalorder %s33, 0
      %p238 = por %p236, %p237
      %s240 = sadd.s32 %s239, 1
      %p243 = scmp.eq.s32.totalorder %s27, 1
      %p244 = scmp.ne.s32.totalorder %s239, %s241
      %p245 = scmp.eq.s32.totalorder %s27, 0
      %p246 = por %p244, %p245
      %p247 = scmp.ne.s32.totalorder %s239, %s241
      %p248 = scmp.eq.s32.totalorder %s32, 1
      %p249 = por %p247, %p248
      %p250 = scmp.ne.s32.totalorder %s241, %s242
      %p251 = scmp.eq.s32.totalorder %s32, 0
      %p252 = por %p250, %p251
      %p253 = scmp.ne.s32.totalorder %s241, %s242
      %p254 = scmp.eq.s32.totalorder %s33, 1
      %p255 = por %p253, %p254
      %p257 = scmp.ne.s32.totalorder %s242, %s256
      %p258 = scmp.eq.s32.totalorder %s33, 0
      %p259 = por %p257, %p258
      %s261 = sadd.s32 %s260, 1
      %p264 = scmp.eq.s32.totalorder %s27, 1
      %p265 = scmp.ne.s32.totalorder %s260, %s262
      %p266 = scmp.eq.s32.totalorder %s27, 0
      %p267 = por %p265, %p266
      %p268 = scmp.ne.s32.totalorder %s260, %s262
      %p269 = scmp.eq.s32.totalorder %s32, 1
      %p270 = por %p268, %p269
      %p271 = scmp.ne.s32.totalorder %s262, %s263
      %p272 = scmp.eq.s32.totalorder %s32, 0
      %p273 = por %p271, %p272
      %p274 = scmp.ne.s32.totalorder %s262, %s263
      %p275 = scmp.eq.s32.totalorder %s33, 1
      %p276 = por %p274, %p275
      %p278 = scmp.ne.s32.totalorder %s263, %s277
      %p279 = scmp.eq.s32.totalorder %s33, 0
      %p280 = por %p278, %p279
      %s281 = ssub.s32 %s27, %s34
      %p282 = scmp.eq.s32.totalorder %s281, 0
      %s284 = sadd.s32 %s283, 1
      %s285 = scalar_select %p282, %s283, %s284
      %p288 = pneg %p282
      %p289 = scmp.eq.s32.totalorder %s27, 1
      %p290 = por %p288, %p289
      %p291 = scmp.ne.s32.totalorder %s283, %s286
      %p292 = scmp.eq.s32.totalorder %s27, 0
      %p293 = por %p291, %p292
      %p294 = scmp.ne.s32.totalorder %s283, %s286
      %p295 = scmp.eq.s32.totalorder %s32, 1
      %p296 = por %p294, %p295
      %p297 = scmp.ne.s32.totalorder %s286, %s287
      %p298 = scmp.eq.s32.totalorder %s32, 0
      %p299 = por %p297, %p298
      %p300 = scmp.ne.s32.totalorder %s286, %s287
      %p301 = scmp.eq.s32.totalorder %s33, 1
      %p302 = por %p300, %p301
      %p304 = scmp.ne.s32.totalorder %s287, %s303
      %p305 = scmp.eq.s32.totalorder %s33, 0
      %p306 = por %p304, %p305
      %p307 = scmp.le.s32.totalorder 1, %s27
      %p308 = scmp.lt.s32.totalorder %s27, 3
      %p309 = pnand %p307, %p308
      %p310 = pneg %p309
      // Predicated region
      $region9: #{tpu_custom_call.1} parent=5 // pred_check
        _
      $region10: #{tpu_custom_call.1} parent=5 // pred_check_branch
        %312 = sbr.rel (%p309) target = $region12
      $region11: #{tpu_custom_call.1} parent=5 // pred_region
        %s313 = ssub.s32 %s27, 1
        // Predicated region
        $region13: #{tpu_custom_call.1} parent=11 // pred_check
          %p314 = pneg %p126
        $region14: #{tpu_custom_call.1} parent=11 // pred_check_branch
          %316 = sbr.rel (%p314) target = $region16
        $region15: #{tpu_custom_call.1} parent=11 // pred_region
          _
        $region16: #{tpu_custom_call.1} parent=11 // pred_fallthru
          _
        // Predicated region
        $region17: #{tpu_custom_call.1} parent=11 // pred_check
          %p317 = pneg %p147
        $region18: #{tpu_custom_call.1} parent=11 // pred_check_branch
          %319 = sbr.rel (%p317) target = $region20
        $region19: #{tpu_custom_call.1} parent=11 // pred_region
          _
        $region20: #{tpu_custom_call.1} parent=11 // pred_fallthru
          _
        // Predicated region
        $region21: #{tpu_custom_call.1} parent=11 // pred_check
          %p320 = pneg %p168
        $region22: #{tpu_custom_call.1} parent=11 // pred_check_branch
          %322 = sbr.rel (%p320) target = $region24
        $region23: #{tpu_custom_call.1} parent=11 // pred_region
          %s324 = ssub.s32 10240, 10240
          %325 = vsyncadd [#allocation9], %s324
          %s326 = sshll.u32 [#allocation8], 4
          %s327 = int_to_ptr.vmem [resolvable:$true] %s326
          %332 = dma.hbm_to_vmem [thread:$0]  %s5, 10240, %s327, [#allocation9], 128, 128, 8
        $region24: #{tpu_custom_call.1} parent=11 // pred_fallthru
          _
        // Predicated region
        $region25: #{tpu_custom_call.1} parent=11 // pred_check
          %p333 = pneg %p189
        $region26: #{tpu_custom_call.1} parent=11 // pred_check_branch
          %335 = sbr.rel (%p333) target = $region28
        $region27: #{tpu_custom_call.1} parent=11 // pred_region
          _
        $region28: #{tpu_custom_call.1} parent=11 // pred_fallthru
          _
        // Predicated region
        $region29: #{tpu_custom_call.1} parent=11 // pred_check
          %p336 = pneg %p210
        $region30: #{tpu_custom_call.1} parent=11 // pred_check_branch
          %338 = sbr.rel (%p336) target = $region32
        $region31: #{tpu_custom_call.1} parent=11 // pred_region
          _
        $region32: #{tpu_custom_call.1} parent=11 // pred_fallthru
          _
        // Predicated region
        $region33: #{tpu_custom_call.1} parent=11 // pred_check
          %p339 = pneg %p231
        $region34: #{tpu_custom_call.1} parent=11 // pred_check_branch
          %341 = sbr.rel (%p339) target = $region36
        $region35: #{tpu_custom_call.1} parent=11 // pred_region
          _
        $region36: #{tpu_custom_call.1} parent=11 // pred_fallthru
          _
        // Predicated region
        $region37: #{tpu_custom_call.1} parent=11 // pred_check
          %p342 = pneg %p252
        $region38: #{tpu_custom_call.1} parent=11 // pred_check_branch
          %344 = sbr.rel (%p342) target = $region40
        $region39: #{tpu_custom_call.1} parent=11 // pred_region
          %s346 = ssub.s32 3072, 3072
          %347 = vsyncadd [#allocation9], %s346
          %s348 = sshll.u32 [#allocation10], 4
          %s349 = int_to_ptr.vmem [resolvable:$true] %s348
          %354 = dma.hbm_to_vmem [thread:$0]  %s9, 3072, %s349, [#allocation9], 64, 64, 4
        $region40: #{tpu_custom_call.1} parent=11 // pred_fallthru
          _
        // Predicated region
        $region41: #{tpu_custom_call.1} parent=11 // pred_check
          %p355 = pneg %p273
        $region42: #{tpu_custom_call.1} parent=11 // pred_check_branch
          %357 = sbr.rel (%p355) target = $region44
        $region43: #{tpu_custom_call.1} parent=11 // pred_region
          _
        $region44: #{tpu_custom_call.1} parent=11 // pred_fallthru
          _
      $region12: #{tpu_custom_call.1} parent=5 // pred_fallthru
        _
      %p358 = scmp.lt.s32.totalorder %s27, 2
      // Predicated region
      $region45: #{tpu_custom_call.1} parent=5 // pred_check
        %p359 = pneg %p358
      $region46: #{tpu_custom_call.1} parent=5 // pred_check_branch
        %361 = sbr.rel (%p359) target = $region48
      $region47: #{tpu_custom_call.1} parent=5 // pred_region
        // Predicated region
        $region49: #{tpu_custom_call.1} parent=47 // pred_check
          %p362 = pneg %p47
        $region50: #{tpu_custom_call.1} parent=47 // pred_check_branch
          %364 = sbr.rel (%p362) target = $region52
        $region51: #{tpu_custom_call.1} parent=47 // pred_region
          %s365 = sand.u32 %s37, 1
          %s366 = scalar_lea.sflag [#allocation3], %s365
          %s367 = sand.u32 %s37, 1
          %s368 = smul.addr %s367, 32
          %s369 = scalar_lea.vmem [#allocation2], %s368
          %s370 = smul.u32 4, %s27
          %s372 = ssub.s32 512, 512
          %373 = vsyncadd %s366, %s372
          %s374 = smul.addr %s370, 128
          %s375 = scalar_lea.hbm %s0, %s374
          %s376 = sshll.u32 %s369, 4
          %s377 = int_to_ptr.vmem [resolvable:$true] %s376
          %382 = dma.hbm_to_vmem [thread:$0]  %s375, 512, %s377, %s366, 128, 128, 8
        $region52: #{tpu_custom_call.1} parent=47 // pred_fallthru
          _
        // Predicated region
        $region53: #{tpu_custom_call.1} parent=47 // pred_check
          %p383 = pneg %p73
        $region54: #{tpu_custom_call.1} parent=47 // pred_check_branch
          %385 = sbr.rel (%p383) target = $region56
        $region55: #{tpu_custom_call.1} parent=47 // pred_region
          %s386 = sand.u32 %s27, 1
          %s387 = scalar_lea.sflag [#allocation6], %s386
          %s388 = sand.u32 %s63, 1
          %s389 = smul.addr %s388, 64
          %s390 = scalar_lea.vmem [#allocation5], %s389
          %s391 = smul.u32 4, %s27
          %s393 = ssub.s32 1024, 1024
          %394 = vsyncadd %s387, %s393
          %s395 = smul.addr %s391, 2
          %s396 = smul.addr %s395, 128
          %s397 = scalar_lea.hbm %s1, %s396
          %s398 = sshll.u32 %s390, 4
          %s399 = int_to_ptr.vmem [resolvable:$true] %s398
          %404 = dma.hbm_to_vmem [thread:$0]  %s397, 1024, %s399, %s387, 256, 256, 16
        $region56: #{tpu_custom_call.1} parent=47 // pred_fallthru
          _
        // Predicated region
        $region57: #{tpu_custom_call.1} parent=47 // pred_check
          %p405 = pneg %p99
        $region58: #{tpu_custom_call.1} parent=47 // pred_check_branch
          %407 = sbr.rel (%p405) target = $region60
        $region59: #{tpu_custom_call.1} parent=47 // pred_region
          %s408 = sand.u32 %s27, 1
          %s409 = scalar_lea.sflag [#allocation6], %s408
          %s410 = sand.u32 %s89, 1
          %s411 = smul.addr %s410, 64
          %s412 = scalar_lea.vmem [#allocation7], %s411
          %s413 = smul.u32 4, %s27
          %s415 = ssub.s32 1024, 1024
          %416 = vsyncadd %s409, %s415
          %s417 = smul.addr %s413, 2
          %s418 = smul.addr %s417, 128
          %s419 = scalar_lea.hbm %s2, %s418
          %s420 = sshll.u32 %s412, 4
          %s421 = int_to_ptr.vmem [resolvable:$true] %s420
          %426 = dma.hbm_to_vmem [thread:$0]  %s419, 1024, %s421, %s409, 256, 256, 16
        $region60: #{tpu_custom_call.1} parent=47 // pred_fallthru
          _
      $region48: #{tpu_custom_call.1} parent=5 // pred_fallthru
        _
      %p427 = scmp.le.s32.totalorder 1, %s27
      %p428 = scmp.lt.s32.totalorder %s27, 3
      %p429 = pnand %p427, %p428
      %p430 = pneg %p429
      // Predicated region
      $region61: #{tpu_custom_call.1} parent=5 // pred_check
        _
      $region62: #{tpu_custom_call.1} parent=5 // pred_check_branch
        %432 = sbr.rel (%p429) target = $region64
      $region63: #{tpu_custom_call.1} parent=5 // pred_region
        %s433 = ssub.s32 %s27, 1
        %s434 = sand.u32 %s40, 1
        %s435 = scalar_lea.sflag [#allocation3], %s434
        %s436 = sand.u32 %s40, 1
        %s437 = smul.addr %s436, 32
        %s438 = scalar_lea.vmem [#allocation2], %s437
        // Predicated region
        $region65: #{tpu_custom_call.1} parent=63 // pred_check
          %p439 = pneg %p53
        $region66: #{tpu_custom_call.1} parent=63 // pred_check_branch
          %441 = sbr.rel (%p439) target = $region68
        $region67: #{tpu_custom_call.1} parent=63 // pred_region
          %442 = dma.done %s435, 512
        $region68: #{tpu_custom_call.1} parent=63 // pred_fallthru
          _
        %s443 = sand.u32 %s32, 1
        %s444 = scalar_lea.sflag [#allocation6], %s443
        %s445 = sand.u32 %s66, 1
        %s446 = smul.addr %s445, 64
        %s447 = scalar_lea.vmem [#allocation5], %s446
        // Predicated region
        $region69: #{tpu_custom_call.1} parent=63 // pred_check
          %p448 = pneg %p79
        $region70: #{tpu_custom_call.1} parent=63 // pred_check_branch
          %450 = sbr.rel (%p448) target = $region72
        $region71: #{tpu_custom_call.1} parent=63 // pred_region
          %451 = dma.done %s444, 1024
        $region72: #{tpu_custom_call.1} parent=63 // pred_fallthru
          _
        %s452 = sand.u32 %s32, 1
        %s453 = scalar_lea.sflag [#allocation6], %s452
        %s454 = sand.u32 %s92, 1
        %s455 = smul.addr %s454, 64
        %s456 = scalar_lea.vmem [#allocation7], %s455
        // Predicated region
        $region73: #{tpu_custom_call.1} parent=63 // pred_check
          %p457 = pneg %p105
        $region74: #{tpu_custom_call.1} parent=63 // pred_check_branch
          %459 = sbr.rel (%p457) target = $region76
        $region75: #{tpu_custom_call.1} parent=63 // pred_region
          %460 = dma.done %s453, 1024
        $region76: #{tpu_custom_call.1} parent=63 // pred_fallthru
          _
        // Predicated region
        $region77: #{tpu_custom_call.1} parent=63 // pred_check
          %p461 = pneg %p168
        $region78: #{tpu_custom_call.1} parent=63 // pred_check_branch
          %463 = sbr.rel (%p461) target = $region80
        $region79: #{tpu_custom_call.1} parent=63 // pred_region
          %464 = dma.done [#allocation9], 10240
        $region80: #{tpu_custom_call.1} parent=63 // pred_fallthru
          _
        // Predicated region
        $region81: #{tpu_custom_call.1} parent=63 // pred_check
          %p465 = pneg %p252
        $region82: #{tpu_custom_call.1} parent=63 // pred_check_branch
          %467 = sbr.rel (%p465) target = $region84
        $region83: #{tpu_custom_call.1} parent=63 // pred_region
          %468 = dma.done [#allocation9], 3072
        $region84: #{tpu_custom_call.1} parent=63 // pred_fallthru
          _
        %s469 = sand.u32 %s40, 1
        %s470 = scalar_lea.sflag [#allocation3], %s469
        %s471 = sand.u32 %s40, 1
        %s472 = smul.addr %s471, 32
        %s473 = scalar_lea.vmem [#allocation2], %s472
        %p474 = pneg %p53
        %p475 = pneg %p50
        %s476 = sand.u32 %s32, 1
        %s477 = scalar_lea.sflag [#allocation6], %s476
        %s478 = sand.u32 %s66, 1
        %s479 = smul.addr %s478, 64
        %s480 = scalar_lea.vmem [#allocation5], %s479
        %p481 = pneg %p79
        %p482 = pneg %p76
        %s483 = sand.u32 %s32, 1
        %s484 = scalar_lea.sflag [#allocation6], %s483
        %s485 = sand.u32 %s92, 1
        %s486 = smul.addr %s485, 64
        %s487 = scalar_lea.vmem [#allocation7], %s486
        %p488 = pneg %p105
        %p489 = pneg %p102
        %p490 = pneg %p126
        %p491 = pneg %p123
        %p492 = pneg %p147
        %p493 = pneg %p144
        %p494 = pneg %p168
        %p495 = pneg %p165
        %p496 = pneg %p189
        %p497 = pneg %p186
        %p498 = pneg %p210
        %p499 = pneg %p207
        %p500 = pneg %p231
        %p501 = pneg %p228
        %p502 = pneg %p252
        %p503 = pneg %p249
        %p504 = pneg %p273
        %p505 = pneg %p270
        %p506 = pneg %p299
        %p507 = pneg %p296
        %s508 = sand.u32 %s286, 1
        %s509 = scalar_lea.sflag [#allocation4], %s508
        %s510 = sand.u32 %s286, 1
        %s511 = smul.addr %s510, 32
        %s512 = scalar_lea.vmem [#allocation11], %s511
        %s513 = smul.u32 4, %s32
        %s514 = smul.u32 4, %s32
        %s515 = smul.u32 4, %s32
        %s516 = smul.u32 4, %s32
        %v518 = vld [vmem:[%s438] sm:$0xff]
        %v519 = vld [vmem:[%s438 + $0x8] sm:$0xff]
        %v520 = vld [vmem:[%s438 + $0x10] sm:$0xff]
        %v521 = vld [vmem:[%s438 + $0x18] sm:$0xff]
        %v522 = vld [vmem:[%s3] sm:$0x1]
        %v523 = vld [vmem:[%s4] sm:$0x1]
        %524 = vadd.xlane.f32.xlu0 %v518
        %v525 = vpop.xlane.xlu0 %524
        %526 = vadd.xlane.f32.xlu0 %v519
        %v527 = vpop.xlane.xlu0 %526
        %528 = vadd.xlane.f32.xlu0 %v520
        %v529 = vpop.xlane.xlu0 %528
        %530 = vadd.xlane.f32.xlu0 %v521
        %v531 = vpop.xlane.xlu0 %530
        %v532 = vrcp.pop 128.0
        %v533 = vmul.f32 %v525, %v532
        %v534 = vmul.f32 %v527, %v532
        %v535 = vmul.f32 %v529, %v532
        %v536 = vmul.f32 %v531, %v532
        %v537 = vsub.f32 %v518, %v533
        %v538 = vsub.f32 %v519, %v534
        %v539 = vsub.f32 %v520, %v535
        %v540 = vsub.f32 %v521, %v536
        %v541 = vmul.f32 %v537, %v537
        %v542 = vmul.f32 %v538, %v538
        %v543 = vmul.f32 %v539, %v539
        %v544 = vmul.f32 %v540, %v540
        %545 = vadd.xlane.f32.xlu0 %v541
        %v546 = vpop.xlane.xlu0 %545
        %547 = vadd.xlane.f32.xlu0 %v542
        %v548 = vpop.xlane.xlu0 %547
        %549 = vadd.xlane.f32.xlu0 %v543
        %v550 = vpop.xlane.xlu0 %549
        %551 = vadd.xlane.f32.xlu0 %v544
        %v552 = vpop.xlane.xlu0 %551
        %v553 = vmul.f32 %v546, %v532
        %v554 = vmul.f32 %v548, %v532
        %v555 = vmul.f32 %v550, %v532
        %v556 = vmul.f32 %v552, %v532
        %v557 = vadd.f32 %v553, 1e-05
        %v558 = vadd.f32 %v554, 1e-05
        %v559 = vadd.f32 %v555, 1e-05
        %v560 = vadd.f32 %v556, 1e-05
        %v561 = vrsqrt.pop %v557
        %v562 = vrsqrt.pop %v558
        %v563 = vrsqrt.pop %v559
        %v564 = vrsqrt.pop %v560
        %v565 = vmul.f32 %v537, %v561
        %v566 = vmul.f32 %v538, %v562
        %v567 = vmul.f32 %v539, %v563
        %v568 = vmul.f32 %v540, %v564
        %v570 = vlaneseq
        %v571 = vshrl.u32 %v570, 7
        %v572 = vsub.s32 0, %v571
        %v573 = vrot.slane %v522, %v572
        %v575 = vmul.f32 %v565, %v573
        %v576 = vmul.f32 %v566, %v573
        %v577 = vmul.f32 %v567, %v573
        %v578 = vmul.f32 %v568, %v573
        %v580 = vlaneseq
        %v581 = vshrl.u32 %v580, 7
        %v582 = vsub.s32 0, %v581
        %v583 = vrot.slane %v523, %v582
        %v585 = vadd.f32 %v575, %v583
        %v586 = vadd.f32 %v576, %v583
        %v587 = vadd.f32 %v577, %v583
        %v588 = vadd.f32 %v578, %v583
        %v589 = vxor.u32 %v585, 2147483648
        %v590 = vxor.u32 %v586, 2147483648
        %v591 = vxor.u32 %v587, 2147483648
        %v592 = vxor.u32 %v588, 2147483648
        %v593 = vmul.f32 %v589, 1.442695
        %v594 = vpow.pop %v593
        %v595 = vmul.f32 %v590, 1.442695
        %v596 = vpow.pop %v595
        %v597 = vmul.f32 %v591, 1.442695
        %v598 = vpow.pop %v597
        %v599 = vmul.f32 %v592, 1.442695
        %v600 = vpow.pop %v599
        %v601 = vadd.f32 %v594, 1.0
        %v602 = vadd.f32 %v596, 1.0
        %v603 = vadd.f32 %v598, 1.0
        %v604 = vadd.f32 %v600, 1.0
        %v605 = vrcp.pop %v601
        %v606 = vmul.f32 1.0, %v605
        %v607 = vrcp.pop %v602
        %v608 = vmul.f32 1.0, %v607
        %v609 = vrcp.pop %v603
        %v610 = vmul.f32 1.0, %v609
        %v611 = vrcp.pop %v604
        %v612 = vmul.f32 1.0, %v611
        %v613 = vmul.f32 %v585, %v606
        %v614 = vmul.f32 %v586, %v608
        %v615 = vmul.f32 %v587, %v610
        %v616 = vmul.f32 %v588, %v612
        %v617 = vld [vmem:[%s447] sm:$0xff]
        %v618 = vld [vmem:[%s447 + $0x8] sm:$0xff]
        %v619 = vld [vmem:[%s447 + $0x10] sm:$0xff]
        %v620 = vld [vmem:[%s447 + $0x18] sm:$0xff]
        %v621 = vld [vmem:[%s447 + $0x20] sm:$0xff]
        %v622 = vld [vmem:[%s447 + $0x28] sm:$0xff]
        %v623 = vld [vmem:[%s447 + $0x30] sm:$0xff]
        %v624 = vld [vmem:[%s447 + $0x38] sm:$0xff]
        %v625 = vxor.u32 %v617, 2147483648
        %v626 = vxor.u32 %v618, 2147483648
        %v627 = vxor.u32 %v619, 2147483648
        %v628 = vxor.u32 %v620, 2147483648
        %v629 = vxor.u32 %v621, 2147483648
        %v630 = vxor.u32 %v622, 2147483648
        %v631 = vxor.u32 %v623, 2147483648
        %v632 = vxor.u32 %v624, 2147483648
        %v633 = vmul.f32 %v625, 1.442695
        %v634 = vpow.pop %v633
        %v635 = vmul.f32 %v626, 1.442695
        %v636 = vpow.pop %v635
        %v637 = vmul.f32 %v627, 1.442695
        %v638 = vpow.pop %v637
        %v639 = vmul.f32 %v628, 1.442695
        %v640 = vpow.pop %v639
        %v641 = vmul.f32 %v629, 1.442695
        %v642 = vpow.pop %v641
        %v643 = vmul.f32 %v630, 1.442695
        %v644 = vpow.pop %v643
        %v645 = vmul.f32 %v631, 1.442695
        %v646 = vpow.pop %v645
        %v647 = vmul.f32 %v632, 1.442695
        %v648 = vpow.pop %v647
        %v649 = vadd.f32 %v634, 1.0
        %v650 = vadd.f32 %v636, 1.0
        %v651 = vadd.f32 %v638, 1.0
        %v652 = vadd.f32 %v640, 1.0
        %v653 = vadd.f32 %v642, 1.0
        %v654 = vadd.f32 %v644, 1.0
        %v655 = vadd.f32 %v646, 1.0
        %v656 = vadd.f32 %v648, 1.0
        %v657 = vrcp.pop %v649
        %v658 = vmul.f32 1.0, %v657
        %v659 = vrcp.pop %v650
        %v660 = vmul.f32 1.0, %v659
        %v661 = vrcp.pop %v651
        %v662 = vmul.f32 1.0, %v661
        %v663 = vrcp.pop %v652
        %v664 = vmul.f32 1.0, %v663
        %v665 = vrcp.pop %v653
        %v666 = vmul.f32 1.0, %v665
        %v667 = vrcp.pop %v654
        %v668 = vmul.f32 1.0, %v667
        %v669 = vrcp.pop %v655
        %v670 = vmul.f32 1.0, %v669
        %v671 = vrcp.pop %v656
        %v672 = vmul.f32 1.0, %v671
        %v673 = vmul.f32 %v617, %v658
        %v674 = vmul.f32 %v618, %v660
        %v675 = vmul.f32 %v619, %v662
        %v676 = vmul.f32 %v620, %v664
        %v677 = vmul.f32 %v621, %v666
        %v678 = vmul.f32 %v622, %v668
        %v679 = vmul.f32 %v623, %v670
        %v680 = vmul.f32 %v624, %v672
        %v681 = vld [vmem:[%s456] sm:$0xff]
        %v682 = vld [vmem:[%s456 + $0x8] sm:$0xff]
        %v683 = vld [vmem:[%s456 + $0x10] sm:$0xff]
        %v684 = vld [vmem:[%s456 + $0x18] sm:$0xff]
        %v685 = vld [vmem:[%s456 + $0x20] sm:$0xff]
        %v686 = vld [vmem:[%s456 + $0x28] sm:$0xff]
        %v687 = vld [vmem:[%s456 + $0x30] sm:$0xff]
        %v688 = vld [vmem:[%s456 + $0x38] sm:$0xff]
        %v689 = vxor.u32 %v681, 2147483648
        %v690 = vxor.u32 %v682, 2147483648
        %v691 = vxor.u32 %v683, 2147483648
        %v692 = vxor.u32 %v684, 2147483648
        %v693 = vxor.u32 %v685, 2147483648
        %v694 = vxor.u32 %v686, 2147483648
        %v695 = vxor.u32 %v687, 2147483648
        %v696 = vxor.u32 %v688, 2147483648
        %v697 = vmul.f32 %v689, 1.442695
        %v698 = vpow.pop %v697
        %v699 = vmul.f32 %v690, 1.442695
        %v700 = vpow.pop %v699
        %v701 = vmul.f32 %v691, 1.442695
        %v702 = vpow.pop %v701
        %v703 = vmul.f32 %v692, 1.442695
        %v704 = vpow.pop %v703
        %v705 = vmul.f32 %v693, 1.442695
        %v706 = vpow.pop %v705
        %v707 = vmul.f32 %v694, 1.442695
        %v708 = vpow.pop %v707
        %v709 = vmul.f32 %v695, 1.442695
        %v710 = vpow.pop %v709
        %v711 = vmul.f32 %v696, 1.442695
        %v712 = vpow.pop %v711
        %v713 = vadd.f32 %v698, 1.0
        %v714 = vadd.f32 %v700, 1.0
        %v715 = vadd.f32 %v702, 1.0
        %v716 = vadd.f32 %v704, 1.0
        %v717 = vadd.f32 %v706, 1.0
        %v718 = vadd.f32 %v708, 1.0
        %v719 = vadd.f32 %v710, 1.0
        %v720 = vadd.f32 %v712, 1.0
        %v721 = vrcp.pop %v713
        %v722 = vmul.f32 1.0, %v721
        %v723 = vrcp.pop %v714
        %v724 = vmul.f32 1.0, %v723
        %v725 = vrcp.pop %v715
        %v726 = vmul.f32 1.0, %v725
        %v727 = vrcp.pop %v716
        %v728 = vmul.f32 1.0, %v727
        %v729 = vrcp.pop %v717
        %v730 = vmul.f32 1.0, %v729
        %v731 = vrcp.pop %v718
        %v732 = vmul.f32 1.0, %v731
        %v733 = vrcp.pop %v719
        %v734 = vmul.f32 1.0, %v733
        %v735 = vrcp.pop %v720
        %v736 = vmul.f32 1.0, %v735
        %v737 = vmul.f32 %v681, %v722
        %v738 = vmul.f32 %v682, %v724
        %v739 = vmul.f32 %v683, %v726
        %v740 = vmul.f32 %v684, %v728
        %v741 = vmul.f32 %v685, %v730
        %v742 = vmul.f32 %v686, %v732
        %v743 = vmul.f32 %v687, %v734
        %v744 = vmul.f32 %v688, %v736
        %v745 = vpack.c.bf16 %v614, %v613
        %v746 = vpack.c.bf16 %v675, %v673
        %v747 = vpack.c.bf16 %v676, %v674
        %v748 = vpack.c.bf16 %v739, %v737
        %v749 = vpack.c.bf16 %v740, %v738
        %v750 = vpack.c.bf16 %v616, %v615
        %v751 = vpack.c.bf16 %v679, %v677
        %v752 = vpack.c.bf16 %v680, %v678
        %v753 = vpack.c.bf16 %v743, %v741
        %v754 = vpack.c.bf16 %v744, %v742
        %v755 = vld [vmem:[#allocation8] sm:$0xff]
        %v756 = vld [vmem:[#allocation8 + $0x8] sm:$0xff]
        %v757 = vld [vmem:[#allocation8 + $0x10] sm:$0xff]
        %v758 = vld [vmem:[#allocation8 + $0x18] sm:$0xff]
        %v759 = vld [vmem:[#allocation8 + $0x20] sm:$0xff]
        %v760 = vld [vmem:[#allocation8 + $0x28] sm:$0xff]
        %v761 = vld [vmem:[#allocation8 + $0x30] sm:$0xff]
        %v762 = vld [vmem:[#allocation8 + $0x38] sm:$0xff]
        %v763 = vld [vmem:[#allocation8 + $0x40] sm:$0xff]
        %v764 = vld [vmem:[#allocation8 + $0x48] sm:$0xff]
        %v765 = vld [vmem:[#allocation8 + $0x50] sm:$0xff]
        %v766 = vld [vmem:[#allocation8 + $0x58] sm:$0xff]
        %v767 = vld [vmem:[#allocation8 + $0x60] sm:$0xff]
        %v768 = vld [vmem:[#allocation8 + $0x68] sm:$0xff]
        %v769 = vld [vmem:[#allocation8 + $0x70] sm:$0xff]
        %v770 = vld [vmem:[#allocation8 + $0x78] sm:$0xff]
        %v771 = vld [vmem:[#allocation8 + $0x80] sm:$0xff]
        %v772 = vld [vmem:[#allocation8 + $0x88] sm:$0xff]
        %v773 = vld [vmem:[#allocation8 + $0x90] sm:$0xff]
        %v774 = vld [vmem:[#allocation8 + $0x98] sm:$0xff]
        %v775 = vld [vmem:[#allocation8 + $0xa0] sm:$0xff]
        %v776 = vld [vmem:[#allocation8 + $0xa8] sm:$0xff]
        %v777 = vld [vmem:[#allocation8 + $0xb0] sm:$0xff]
        %v778 = vld [vmem:[#allocation8 + $0xb8] sm:$0xff]
        %v779 = vld [vmem:[#allocation8 + $0xc0] sm:$0xff]
        %v780 = vld [vmem:[#allocation8 + $0xc8] sm:$0xff]
        %v781 = vld [vmem:[#allocation8 + $0xd0] sm:$0xff]
        %v782 = vld [vmem:[#allocation8 + $0xd8] sm:$0xff]
        %v783 = vld [vmem:[#allocation8 + $0xe0] sm:$0xff]
        %v784 = vld [vmem:[#allocation8 + $0xe8] sm:$0xff]
        %v785 = vld [vmem:[#allocation8 + $0xf0] sm:$0xff]
        %v786 = vld [vmem:[#allocation8 + $0xf8] sm:$0xff]
        %v787 = vld [vmem:[#allocation8 + $0x100] sm:$0xff]
        %v788 = vld [vmem:[#allocation8 + $0x108] sm:$0xff]
        %v789 = vld [vmem:[#allocation8 + $0x110] sm:$0xff]
        %v790 = vld [vmem:[#allocation8 + $0x118] sm:$0xff]
        %v791 = vld [vmem:[#allocation8 + $0x120] sm:$0xff]
        %v792 = vld [vmem:[#allocation8 + $0x128] sm:$0xff]
        %v793 = vld [vmem:[#allocation8 + $0x130] sm:$0xff]
        %v794 = vld [vmem:[#allocation8 + $0x138] sm:$0xff]
        %v795 = vld [vmem:[#allocation8 + $0x140] sm:$0xff]
        %v796 = vld [vmem:[#allocation8 + $0x148] sm:$0xff]
        %v797 = vld [vmem:[#allocation8 + $0x150] sm:$0xff]
        %v798 = vld [vmem:[#allocation8 + $0x158] sm:$0xff]
        %v799 = vld [vmem:[#allocation8 + $0x160] sm:$0xff]
        %v800 = vld [vmem:[#allocation8 + $0x168] sm:$0xff]
        %v801 = vld [vmem:[#allocation8 + $0x170] sm:$0xff]
        %v802 = vld [vmem:[#allocation8 + $0x178] sm:$0xff]
        %v803 = vld [vmem:[#allocation8 + $0x180] sm:$0xff]
        %v804 = vld [vmem:[#allocation8 + $0x188] sm:$0xff]
        %v805 = vld [vmem:[#allocation8 + $0x190] sm:$0xff]
        %v806 = vld [vmem:[#allocation8 + $0x198] sm:$0xff]
        %v807 = vld [vmem:[#allocation8 + $0x1a0] sm:$0xff]
        %v808 = vld [vmem:[#allocation8 + $0x1a8] sm:$0xff]
        %v809 = vld [vmem:[#allocation8 + $0x1b0] sm:$0xff]
        %v810 = vld [vmem:[#allocation8 + $0x1b8] sm:$0xff]
        %v811 = vld [vmem:[#allocation8 + $0x1c0] sm:$0xff]
        %v812 = vld [vmem:[#allocation8 + $0x1c8] sm:$0xff]
        %v813 = vld [vmem:[#allocation8 + $0x1d0] sm:$0xff]
        %v814 = vld [vmem:[#allocation8 + $0x1d8] sm:$0xff]
        %v815 = vld [vmem:[#allocation8 + $0x1e0] sm:$0xff]
        %v816 = vld [vmem:[#allocation8 + $0x1e8] sm:$0xff]
        %v817 = vld [vmem:[#allocation8 + $0x1f0] sm:$0xff]
        %v818 = vld [vmem:[#allocation8 + $0x1f8] sm:$0xff]
        %v819 = vld [vmem:[#allocation8 + $0x200] sm:$0xff]
        %v820 = vld [vmem:[#allocation8 + $0x208] sm:$0xff]
        %v821 = vld [vmem:[#allocation8 + $0x210] sm:$0xff]
        %v822 = vld [vmem:[#allocation8 + $0x218] sm:$0xff]
        %v823 = vld [vmem:[#allocation8 + $0x220] sm:$0xff]
        %v824 = vld [vmem:[#allocation8 + $0x228] sm:$0xff]
        %v825 = vld [vmem:[#allocation8 + $0x230] sm:$0xff]
        %v826 = vld [vmem:[#allocation8 + $0x238] sm:$0xff]
        %v827 = vld [vmem:[#allocation8 + $0x240] sm:$0xff]
        %v828 = vld [vmem:[#allocation8 + $0x248] sm:$0xff]
        %v829 = vld [vmem:[#allocation8 + $0x250] sm:$0xff]
        %v830 = vld [vmem:[#allocation8 + $0x258] sm:$0xff]
        %v831 = vld [vmem:[#allocation8 + $0x260] sm:$0xff]
        %v832 = vld [vmem:[#allocation8 + $0x268] sm:$0xff]
        %v833 = vld [vmem:[#allocation8 + $0x270] sm:$0xff]
        %v834 = vld [vmem:[#allocation8 + $0x278] sm:$0xff]
        %v835 = vld [vmem:[%s6] sm:$0x3]
        %v837 = vlaneseq
        %v838 = vshrl.u32 %v837, 7
        %v839 = vsub.s32 0, %v838
        %v840 = vrot.slane %v835, %v839
        %v841 = vlaneseq
        %v842 = vshrl.u32 %v841, 7
        %v843 = vsub.s32 1, %v842
        %v844 = vrot.slane %v835, %v843
        %v927 = vunpack.c.l.b16 %v755
        %v928 = vunpack.c.h.b16 %v755
        %v929 = vunpack.c.l.b16 %v756
        %v930 = vunpack.c.h.b16 %v756
        %v931 = vunpack.c.l.b16 %v757
        %v932 = vunpack.c.h.b16 %v757
        %v933 = vunpack.c.l.b16 %v758
        %v934 = vunpack.c.h.b16 %v758
        %v935 = vunpack.c.l.b16 %v759
        %v936 = vunpack.c.h.b16 %v759
        %v937 = vunpack.c.l.b16 %v760
        %v938 = vunpack.c.h.b16 %v760
        %v939 = vunpack.c.l.b16 %v761
        %v940 = vunpack.c.h.b16 %v761
        %v941 = vunpack.c.l.b16 %v762
        %v942 = vunpack.c.h.b16 %v762
        %v943 = vunpack.c.l.b16 %v763
        %v944 = vunpack.c.h.b16 %v763
        %v945 = vunpack.c.l.b16 %v764
        %v946 = vunpack.c.h.b16 %v764
        %v947 = vunpack.c.l.b16 %v765
        %v948 = vunpack.c.h.b16 %v765
        %v949 = vunpack.c.l.b16 %v766
        %v950 = vunpack.c.h.b16 %v766
        %v951 = vunpack.c.l.b16 %v767
        %v952 = vunpack.c.h.b16 %v767
        %v953 = vunpack.c.l.b16 %v768
        %v954 = vunpack.c.h.b16 %v768
        %v955 = vunpack.c.l.b16 %v769
        %v956 = vunpack.c.h.b16 %v769
        %v957 = vunpack.c.l.b16 %v770
        %v958 = vunpack.c.h.b16 %v770
        %v959 = vunpack.c.l.b16 %v771
        %v960 = vunpack.c.h.b16 %v771
        %v961 = vunpack.c.l.b16 %v772
        %v962 = vunpack.c.h.b16 %v772
        %v963 = vunpack.c.l.b16 %v773
        %v964 = vunpack.c.h.b16 %v773
        %v965 = vunpack.c.l.b16 %v774
        %v966 = vunpack.c.h.b16 %v774
        %v967 = vunpack.c.l.b16 %v775
        %v968 = vunpack.c.h.b16 %v775
        %v969 = vunpack.c.l.b16 %v776
        %v970 = vunpack.c.h.b16 %v776
        %v971 = vunpack.c.l.b16 %v777
        %v972 = vunpack.c.h.b16 %v777
        %v973 = vunpack.c.l.b16 %v778
        %v974 = vunpack.c.h.b16 %v778
        %v975 = vunpack.c.l.b16 %v779
        %v976 = vunpack.c.h.b16 %v779
        %v977 = vunpack.c.l.b16 %v780
        %v978 = vunpack.c.h.b16 %v780
        %v979 = vunpack.c.l.b16 %v781
        %v980 = vunpack.c.h.b16 %v781
        %v981 = vunpack.c.l.b16 %v782
        %v982 = vunpack.c.h.b16 %v782
        %v983 = vunpack.c.l.b16 %v783
        %v984 = vunpack.c.h.b16 %v783
        %v985 = vunpack.c.l.b16 %v784
        %v986 = vunpack.c.h.b16 %v784
        %v987 = vunpack.c.l.b16 %v785
        %v988 = vunpack.c.h.b16 %v785
        %v989 = vunpack.c.l.b16 %v786
        %v990 = vunpack.c.h.b16 %v786
        %v991 = vunpack.c.l.b16 %v787
        %v992 = vunpack.c.h.b16 %v787
        %v993 = vunpack.c.l.b16 %v788
        %v994 = vunpack.c.h.b16 %v788
        %v995 = vunpack.c.l.b16 %v789
        %v996 = vunpack.c.h.b16 %v789
        %v997 = vunpack.c.l.b16 %v790
        %v998 = vunpack.c.h.b16 %v790
        %v999 = vunpack.c.l.b16 %v791
        %v1000 = vunpack.c.h.b16 %v791
        %v1001 = vunpack.c.l.b16 %v792
        %v1002 = vunpack.c.h.b16 %v792
        %v1003 = vunpack.c.l.b16 %v793
        %v1004 = vunpack.c.h.b16 %v793
        %v1005 = vunpack.c.l.b16 %v794
        %v1006 = vunpack.c.h.b16 %v794
        %v1007 = vunpack.c.l.b16 %v795
        %v1008 = vunpack.c.h.b16 %v795
        %v1009 = vunpack.c.l.b16 %v796
        %v1010 = vunpack.c.h.b16 %v796
        %v1011 = vunpack.c.l.b16 %v797
        %v1012 = vunpack.c.h.b16 %v797
        %v1013 = vunpack.c.l.b16 %v798
        %v1014 = vunpack.c.h.b16 %v798
        %v1015 = vunpack.c.l.b16 %v799
        %v1016 = vunpack.c.h.b16 %v799
        %v1017 = vunpack.c.l.b16 %v800
        %v1018 = vunpack.c.h.b16 %v800
        %v1019 = vunpack.c.l.b16 %v801
        %v1020 = vunpack.c.h.b16 %v801
        %v1021 = vunpack.c.l.b16 %v802
        %v1022 = vunpack.c.h.b16 %v802
        %v1023 = vunpack.c.l.b16 %v803
        %v1024 = vunpack.c.h.b16 %v803
        %v1025 = vunpack.c.l.b16 %v804
        %v1026 = vunpack.c.h.b16 %v804
        %v1027 = vunpack.c.l.b16 %v805
        %v1028 = vunpack.c.h.b16 %v805
        %v1029 = vunpack.c.l.b16 %v806
        %v1030 = vunpack.c.h.b16 %v806
        %v1031 = vunpack.c.l.b16 %v807
        %v1032 = vunpack.c.h.b16 %v807
        %v1033 = vunpack.c.l.b16 %v808
        %v1034 = vunpack.c.h.b16 %v808
        %v1035 = vunpack.c.l.b16 %v809
        %v1036 = vunpack.c.h.b16 %v809
        %v1037 = vunpack.c.l.b16 %v810
        %v1038 = vunpack.c.h.b16 %v810
        %v1039 = vunpack.c.l.b16 %v811
        %v1040 = vunpack.c.h.b16 %v811
        %v1041 = vunpack.c.l.b16 %v812
        %v1042 = vunpack.c.h.b16 %v812
        %v1043 = vunpack.c.l.b16 %v813
        %v1044 = vunpack.c.h.b16 %v813
        %v1045 = vunpack.c.l.b16 %v814
        %v1046 = vunpack.c.h.b16 %v814
        %v1047 = vunpack.c.l.b16 %v815
        %v1048 = vunpack.c.h.b16 %v815
        %v1049 = vunpack.c.l.b16 %v816
        %v1050 = vunpack.c.h.b16 %v816
        %v1051 = vunpack.c.l.b16 %v817
        %v1052 = vunpack.c.h.b16 %v817
        %v1053 = vunpack.c.l.b16 %v818
        %v1054 = vunpack.c.h.b16 %v818
        %v1055 = vunpack.c.l.b16 %v819
        %v1056 = vunpack.c.h.b16 %v819
        %v1057 = vunpack.c.l.b16 %v820
        %v1058 = vunpack.c.h.b16 %v820
        %v1059 = vunpack.c.l.b16 %v821
        %v1060 = vunpack.c.h.b16 %v821
        %v1061 = vunpack.c.l.b16 %v822
        %v1062 = vunpack.c.h.b16 %v822
        %v1063 = vunpack.c.l.b16 %v823
        %v1064 = vunpack.c.h.b16 %v823
        %v1065 = vunpack.c.l.b16 %v824
        %v1066 = vunpack.c.h.b16 %v824
        %v1067 = vunpack.c.l.b16 %v825
        %v1068 = vunpack.c.h.b16 %v825
        %v1069 = vunpack.c.l.b16 %v826
        %v1070 = vunpack.c.h.b16 %v826
        %v1071 = vunpack.c.l.b16 %v827
        %v1072 = vunpack.c.h.b16 %v827
        %v1073 = vunpack.c.l.b16 %v828
        %v1074 = vunpack.c.h.b16 %v828
        %v1075 = vunpack.c.l.b16 %v829
        %v1076 = vunpack.c.h.b16 %v829
        %v1077 = vunpack.c.l.b16 %v830
        %v1078 = vunpack.c.h.b16 %v830
        %v1079 = vunpack.c.l.b16 %v831
        %v1080 = vunpack.c.h.b16 %v831
        %v1081 = vunpack.c.l.b16 %v832
        %v1082 = vunpack.c.h.b16 %v832
        %v1083 = vunpack.c.l.b16 %v833
        %v1084 = vunpack.c.h.b16 %v833
        %v1085 = vunpack.c.l.b16 %v834
        %v1086 = vunpack.c.h.b16 %v834
        %v1087 = vpack.c.b16 %v929, %v927
        %v1088 = vpack.c.b16 %v930, %v928
        %v1089 = vpack.c.b16 %v933, %v931
        %v1090 = vpack.c.b16 %v934, %v932
        %v1091 = vpack.c.b16 %v937, %v935
        %v1092 = vpack.c.b16 %v938, %v936
        %v1093 = vpack.c.b16 %v941, %v939
        %v1094 = vpack.c.b16 %v942, %v940
        %v1095 = vpack.c.b16 %v945, %v943
        %v1096 = vpack.c.b16 %v946, %v944
        %v1097 = vpack.c.b16 %v949, %v947
        %v1098 = vpack.c.b16 %v950, %v948
        %v1099 = vpack.c.b16 %v953, %v951
        %v1100 = vpack.c.b16 %v954, %v952
        %v1101 = vpack.c.b16 %v957, %v955
        %v1102 = vpack.c.b16 %v958, %v956
        %v1103 = vpack.c.b16 %v961, %v959
        %v1104 = vpack.c.b16 %v962, %v960
        %v1105 = vpack.c.b16 %v965, %v963
        %v1106 = vpack.c.b16 %v966, %v964
        %v1107 = vpack.c.b16 %v969, %v967
        %v1108 = vpack.c.b16 %v970, %v968
        %v1109 = vpack.c.b16 %v973, %v971
        %v1110 = vpack.c.b16 %v974, %v972
        %v1111 = vpack.c.b16 %v977, %v975
        %v1112 = vpack.c.b16 %v978, %v976
        %v1113 = vpack.c.b16 %v981, %v979
        %v1114 = vpack.c.b16 %v982, %v980
        %v1115 = vpack.c.b16 %v985, %v983
        %v1116 = vpack.c.b16 %v986, %v984
        %v1117 = vpack.c.b16 %v989, %v987
        %v1118 = vpack.c.b16 %v990, %v988
        %v1119 = vpack.c.b16 %v993, %v991
        %v1120 = vpack.c.b16 %v994, %v992
        %v1121 = vpack.c.b16 %v997, %v995
        %v1122 = vpack.c.b16 %v998, %v996
        %v1123 = vpack.c.b16 %v1001, %v999
        %v1124 = vpack.c.b16 %v1002, %v1000
        %v1125 = vpack.c.b16 %v1005, %v1003
        %v1126 = vpack.c.b16 %v1006, %v1004
        %v1127 = vpack.c.b16 %v1009, %v1007
        %v1128 = vpack.c.b16 %v1010, %v1008
        %v1129 = vpack.c.b16 %v1013, %v1011
        %v1130 = vpack.c.b16 %v1014, %v1012
        %v1131 = vpack.c.b16 %v1017, %v1015
        %v1132 = vpack.c.b16 %v1018, %v1016
        %v1133 = vpack.c.b16 %v1021, %v1019
        %v1134 = vpack.c.b16 %v1022, %v1020
        %v1135 = vpack.c.b16 %v1025, %v1023
        %v1136 = vpack.c.b16 %v1026, %v1024
        %v1137 = vpack.c.b16 %v1029, %v1027
        %v1138 = vpack.c.b16 %v1030, %v1028
        %v1139 = vpack.c.b16 %v1033, %v1031
        %v1140 = vpack.c.b16 %v1034, %v1032
        %v1141 = vpack.c.b16 %v1037, %v1035
        %v1142 = vpack.c.b16 %v1038, %v1036
        %v1143 = vpack.c.b16 %v1041, %v1039
        %v1144 = vpack.c.b16 %v1042, %v1040
        %v1145 = vpack.c.b16 %v1045, %v1043
        %v1146 = vpack.c.b16 %v1046, %v1044
        %v1147 = vpack.c.b16 %v1049, %v1047
        %v1148 = vpack.c.b16 %v1050, %v1048
        %v1149 = vpack.c.b16 %v1053, %v1051
        %v1150 = vpack.c.b16 %v1054, %v1052
        %v1151 = vpack.c.b16 %v1057, %v1055
        %v1152 = vpack.c.b16 %v1058, %v1056
        %v1153 = vpack.c.b16 %v1061, %v1059
        %v1154 = vpack.c.b16 %v1062, %v1060
        %v1155 = vpack.c.b16 %v1065, %v1063
        %v1156 = vpack.c.b16 %v1066, %v1064
        %v1157 = vpack.c.b16 %v1069, %v1067
        %v1158 = vpack.c.b16 %v1070, %v1068
        %v1159 = vpack.c.b16 %v1073, %v1071
        %v1160 = vpack.c.b16 %v1074, %v1072
        %v1161 = vpack.c.b16 %v1077, %v1075
        %v1162 = vpack.c.b16 %v1078, %v1076
        %v1163 = vpack.c.b16 %v1081, %v1079
        %v1164 = vpack.c.b16 %v1082, %v1080
        %v1165 = vpack.c.b16 %v1085, %v1083
        %v1166 = vpack.c.b16 %v1086, %v1084
        %1247 = vmatprep.subr.bf16.mxu0 %v1088
        %1248 = vmatpush1.bf16.msra.mxu0 %v1087
        %1249 = vmatprep.subr.bf16.mxu0 %v1090
        %1250 = vmatpush1.bf16.msra.mxu0 %v1089
        %1251 = vmatprep.subr.bf16.mxu0 %v1092
        %1252 = vmatpush1.bf16.msra.mxu0 %v1091
        %1253 = vmatprep.subr.bf16.mxu0 %v1094
        %1254 = vmatpush1.bf16.msra.mxu0 %v1093
        %1255 = vmatprep.subr.bf16.mxu0 %v1096
        %1256 = vmatpush1.bf16.msra.mxu0 %v1095
        %1257 = vmatprep.subr.bf16.mxu0 %v1098
        %1258 = vmatpush1.bf16.msra.mxu0 %v1097
        %1259 = vmatprep.subr.bf16.mxu0 %v1100
        %1260 = vmatpush1.bf16.msra.mxu0 %v1099
        %1261 = vmatprep.subr.bf16.mxu0 %v1102
        %1262 = vmatpush1.bf16.msra.mxu0 %v1101
        %1263 = vmatprep.subr.bf16.mxu0 %v1104
        %1264 = vmatpush1.bf16.msra.mxu0 %v1103
        %1265 = vmatprep.subr.bf16.mxu0 %v1106
        %1266 = vmatpush1.bf16.msra.mxu0 %v1105
        %1267 = vmatprep.subr.bf16.mxu0 %v1108
        %1268 = vmatpush1.bf16.msra.mxu0 %v1107
        %1269 = vmatprep.subr.bf16.mxu0 %v1110
        %1270 = vmatpush1.bf16.msra.mxu0 %v1109
        %1271 = vmatprep.subr.bf16.mxu0 %v1112
        %1272 = vmatpush1.bf16.msra.mxu0 %v1111
        %1273 = vmatprep.subr.bf16.mxu0 %v1114
        %1274 = vmatpush1.bf16.msra.mxu0 %v1113
        %1275 = vmatprep.subr.bf16.mxu0 %v1116
        %1276 = vmatpush1.bf16.msra.mxu0 %v1115
        %1277 = vmatprep.subr.bf16.mxu0 %v1118
        %1278 = vmatpush1.bf16.msra.mxu0 %v1117
        %1279 = vmatprep.mubr.bf16.mxu0 %v746
        %1280 = vmatmul.mubr.bf16.gmra.mrb[0].mxu0 %v745
        %v1281 = vpop.f32.mrb[0].mxu0
        %v1282 = vadd.f32 %v840, %v1281
        %v1283 = vpop.f32.mrb[0].mxu0
        %v1284 = vadd.f32 %v844, %v1283
        %v1285 = vpop.f32.mrb[0].mxu0
        %v1286 = vadd.f32 %v840, %v1285
        %v1287 = vpop.f32.mrb[0].mxu0
        %v1288 = vadd.f32 %v844, %v1287
        %1289 = vmatprep.mubr.bf16.mxu0 %v751
        %1290 = vmatmul.mubr.bf16.gmra.mrb[0].mxu0 %v750
        %v1291 = vpop.f32.mrb[0].mxu0
        %v1292 = vadd.f32 %v840, %v1291
        %v1293 = vpop.f32.mrb[0].mxu0
        %v1294 = vadd.f32 %v844, %v1293
        %v1295 = vpop.f32.mrb[0].mxu0
        %v1296 = vadd.f32 %v840, %v1295
        %v1297 = vpop.f32.mrb[0].mxu0
        %v1298 = vadd.f32 %v844, %v1297
        %1299 = vdwg.mxu0
        %1300 = vmatprep.subr.bf16.mxu0 %v1120
        %1301 = vmatpush1.bf16.msra.mxu0 %v1119
        %1302 = vmatprep.subr.bf16.mxu0 %v1122
        %1303 = vmatpush1.bf16.msra.mxu0 %v1121
        %1304 = vmatprep.subr.bf16.mxu0 %v1124
        %1305 = vmatpush1.bf16.msra.mxu0 %v1123
        %1306 = vmatprep.subr.bf16.mxu0 %v1126
        %1307 = vmatpush1.bf16.msra.mxu0 %v1125
        %1308 = vmatprep.subr.bf16.mxu0 %v1128
        %1309 = vmatpush1.bf16.msra.mxu0 %v1127
        %1310 = vmatprep.subr.bf16.mxu0 %v1130
        %1311 = vmatpush1.bf16.msra.mxu0 %v1129
        %1312 = vmatprep.subr.bf16.mxu0 %v1132
        %1313 = vmatpush1.bf16.msra.mxu0 %v1131
        %1314 = vmatprep.subr.bf16.mxu0 %v1134
        %1315 = vmatpush1.bf16.msra.mxu0 %v1133
        %1316 = vmatprep.subr.bf16.mxu0 %v1136
        %1317 = vmatpush1.bf16.msra.mxu0 %v1135
        %1318 = vmatprep.subr.bf16.mxu0 %v1138
        %1319 = vmatpush1.bf16.msra.mxu0 %v1137
        %1320 = vmatprep.subr.bf16.mxu0 %v1140
        %1321 = vmatpush1.bf16.msra.mxu0 %v1139
        %1322 = vmatprep.subr.bf16.mxu0 %v1142
        %1323 = vmatpush1.bf16.msra.mxu0 %v1141
        %1324 = vmatprep.subr.bf16.mxu0 %v1144
        %1325 = vmatpush1.bf16.msra.mxu0 %v1143
        %1326 = vmatprep.subr.bf16.mxu0 %v1146
        %1327 = vmatpush1.bf16.msra.mxu0 %v1145
        %1328 = vmatprep.subr.bf16.mxu0 %v1148
        %1329 = vmatpush1.bf16.msra.mxu0 %v1147
        %1330 = vmatprep.subr.bf16.mxu0 %v1150
        %1331 = vmatpush1.bf16.msra.mxu0 %v1149
        %1332 = vmatprep.mubr.bf16.mxu0 %v748
        %1333 = vmatmul.mubr.bf16.gmra.mrb[0].mxu0 %v747
        %v1334 = vpop.f32.mrb[0].mxu0
        %v1335 = vadd.f32 %v1282, %v1334
        %v1336 = vpop.f32.mrb[0].mxu0
        %v1337 = vadd.f32 %v1284, %v1336
        %v1338 = vpop.f32.mrb[0].mxu0
        %v1339 = vadd.f32 %v1286, %v1338
        %v1340 = vpop.f32.mrb[0].mxu0
        %v1341 = vadd.f32 %v1288, %v1340
        %1342 = vmatprep.mubr.bf16.mxu0 %v753
        %1343 = vmatmul.mubr.bf16.gmra.mrb[0].mxu0 %v752
        %v1344 = vpop.f32.mrb[0].mxu0
        %v1345 = vadd.f32 %v1292, %v1344
        %v1346 = vpop.f32.mrb[0].mxu0
        %v1347 = vadd.f32 %v1294, %v1346
        %v1348 = vpop.f32.mrb[0].mxu0
        %v1349 = vadd.f32 %v1296, %v1348
        %v1350 = vpop.f32.mrb[0].mxu0
        %v1351 = vadd.f32 %v1298, %v1350
        %1352 = vdwg.mxu0
        %1353 = vmatprep.subr.bf16.mxu0 %v1152
        %1354 = vmatpush1.bf16.msra.mxu0 %v1151
        %1355 = vmatprep.subr.bf16.mxu0 %v1154
        %1356 = vmatpush1.bf16.msra.mxu0 %v1153
        %1357 = vmatprep.subr.bf16.mxu0 %v1156
        %1358 = vmatpush1.bf16.msra.mxu0 %v1155
        %1359 = vmatprep.subr.bf16.mxu0 %v1158
        %1360 = vmatpush1.bf16.msra.mxu0 %v1157
        %1361 = vmatprep.subr.bf16.mxu0 %v1160
        %1362 = vmatpush1.bf16.msra.mxu0 %v1159
        %1363 = vmatprep.subr.bf16.mxu0 %v1162
        %1364 = vmatpush1.bf16.msra.mxu0 %v1161
        %1365 = vmatprep.subr.bf16.mxu0 %v1164
        %1366 = vmatpush1.bf16.msra.mxu0 %v1163
        %1367 = vmatprep.subr.bf16.mxu0 %v1166
        %1368 = vmatpush1.bf16.msra.mxu0 %v1165
        %1369 = vmatprep.subr.bf16.mxu0 0
        %1370 = vmatpush1.bf16.msra.mxu0 0
        %1371 = vmatprep.subr.bf16.mxu0 0
        %1372 = vmatpush1.bf16.msra.mxu0 0
        %1373 = vmatprep.subr.bf16.mxu0 0
        %1374 = vmatpush1.bf16.msra.mxu0 0
        %1375 = vmatprep.subr.bf16.mxu0 0
        %1376 = vmatpush1.bf16.msra.mxu0 0
        %1377 = vmatprep.subr.bf16.mxu0 0
        %1378 = vmatpush1.bf16.msra.mxu0 0
        %1379 = vmatprep.subr.bf16.mxu0 0
        %1380 = vmatpush1.bf16.msra.mxu0 0
        %1381 = vmatprep.subr.bf16.mxu0 0
        %1382 = vmatpush1.bf16.msra.mxu0 0
        %1383 = vmatprep.subr.bf16.mxu0 0
        %1384 = vmatpush1.bf16.msra.mxu0 0
        %1385 = vmatprep.mubr.bf16.mxu0 0
        %1386 = vmatmul.mubr.bf16.gmra.mrb[0].mxu0 %v749
        %v1387 = vpop.f32.mrb[0].mxu0
        %v1388 = vadd.f32 %v1335, %v1387
        %v1389 = vpop.f32.mrb[0].mxu0
        %v1390 = vadd.f32 %v1337, %v1389
        %v1391 = vpop.f32.mrb[0].mxu0
        %v1392 = vadd.f32 %v1339, %v1391
        %v1393 = vpop.f32.mrb[0].mxu0
        %v1394 = vadd.f32 %v1341, %v1393
        %1395 = vmatprep.mubr.bf16.mxu0 0
        %1396 = vmatmul.mubr.bf16.gmra.mrb[0].mxu0 %v754
        %v1397 = vpop.f32.mrb[0].mxu0
        %v1398 = vadd.f32 %v1345, %v1397
        %v1399 = vpop.f32.mrb[0].mxu0
        %v1400 = vadd.f32 %v1347, %v1399
        %v1401 = vpop.f32.mrb[0].mxu0
        %v1402 = vadd.f32 %v1349, %v1401
        %v1403 = vpop.f32.mrb[0].mxu0
        %v1404 = vadd.f32 %v1351, %v1403
        %1405 = vdwg.mxu0
        %v1406 = vld [vmem:[%s7] sm:$0x3]
        %v1407 = vld [vmem:[%s8] sm:$0x3]
        %v1408 = vadd.f32 %v1388, %v1390
        %1409 = vadd.xlane.f32.xlu0 %v1408
        %v1410 = vpop.xlane.xlu0 %1409
        %v1411 = vadd.f32 %v1392, %v1394
        %1412 = vadd.xlane.f32.xlu0 %v1411
        %v1413 = vpop.xlane.xlu0 %1412
        %v1414 = vadd.f32 %v1398, %v1400
        %1415 = vadd.xlane.f32.xlu0 %v1414
        %v1416 = vpop.xlane.xlu0 %1415
        %v1417 = vadd.f32 %v1402, %v1404
        %1418 = vadd.xlane.f32.xlu0 %v1417
        %v1419 = vpop.xlane.xlu0 %1418
        %v1420 = vrcp.pop 256.0
        %v1421 = vmul.f32 %v1410, %v1420
        %v1422 = vmul.f32 %v1413, %v1420
        %v1423 = vmul.f32 %v1416, %v1420
        %v1424 = vmul.f32 %v1419, %v1420
        %v1425 = vsub.f32 %v1388, %v1421
        %v1426 = vsub.f32 %v1390, %v1421
        %v1427 = vsub.f32 %v1392, %v1422
        %v1428 = vsub.f32 %v1394, %v1422
        %v1429 = vsub.f32 %v1398, %v1423
        %v1430 = vsub.f32 %v1400, %v1423
        %v1431 = vsub.f32 %v1402, %v1424
        %v1432 = vsub.f32 %v1404, %v1424
        %v1433 = vmul.f32 %v1425, %v1425
        %v1434 = vmul.f32 %v1426, %v1426
        %v1435 = vmul.f32 %v1427, %v1427
        %v1436 = vmul.f32 %v1428, %v1428
        %v1437 = vmul.f32 %v1429, %v1429
        %v1438 = vmul.f32 %v1430, %v1430
        %v1439 = vmul.f32 %v1431, %v1431
        %v1440 = vmul.f32 %v1432, %v1432
        %v1441 = vadd.f32 %v1433, %v1434
        %1442 = vadd.xlane.f32.xlu0 %v1441
        %v1443 = vpop.xlane.xlu0 %1442
        %v1444 = vadd.f32 %v1435, %v1436
        %1445 = vadd.xlane.f32.xlu0 %v1444
        %v1446 = vpop.xlane.xlu0 %1445
        %v1447 = vadd.f32 %v1437, %v1438
        %1448 = vadd.xlane.f32.xlu0 %v1447
        %v1449 = vpop.xlane.xlu0 %1448
        %v1450 = vadd.f32 %v1439, %v1440
        %1451 = vadd.xlane.f32.xlu0 %v1450
        %v1452 = vpop.xlane.xlu0 %1451
        %v1453 = vmul.f32 %v1443, %v1420
        %v1454 = vmul.f32 %v1446, %v1420
        %v1455 = vmul.f32 %v1449, %v1420
        %v1456 = vmul.f32 %v1452, %v1420
        %v1457 = vadd.f32 %v1453, 1e-05
        %v1458 = vadd.f32 %v1454, 1e-05
        %v1459 = vadd.f32 %v1455, 1e-05
        %v1460 = vadd.f32 %v1456, 1e-05
        %v1461 = vrsqrt.pop %v1457
        %v1462 = vrsqrt.pop %v1458
        %v1463 = vrsqrt.pop %v1459
        %v1464 = vrsqrt.pop %v1460
        %v1465 = vmul.f32 %v1425, %v1461
        %v1466 = vmul.f32 %v1426, %v1461
        %v1467 = vmul.f32 %v1427, %v1462
        %v1468 = vmul.f32 %v1428, %v1462
        %v1469 = vmul.f32 %v1429, %v1463
        %v1470 = vmul.f32 %v1430, %v1463
        %v1471 = vmul.f32 %v1431, %v1464
        %v1472 = vmul.f32 %v1432, %v1464
        %v1474 = vlaneseq
        %v1475 = vshrl.u32 %v1474, 7
        %v1476 = vsub.s32 0, %v1475
        %v1477 = vrot.slane %v1406, %v1476
        %v1478 = vlaneseq
        %v1479 = vshrl.u32 %v1478, 7
        %v1480 = vsub.s32 1, %v1479
        %v1481 = vrot.slane %v1406, %v1480
        %v1484 = vmul.f32 %v1465, %v1477
        %v1485 = vmul.f32 %v1466, %v1481
        %v1486 = vmul.f32 %v1467, %v1477
        %v1487 = vmul.f32 %v1468, %v1481
        %v1488 = vmul.f32 %v1469, %v1477
        %v1489 = vmul.f32 %v1470, %v1481
        %v1490 = vmul.f32 %v1471, %v1477
        %v1491 = vmul.f32 %v1472, %v1481
        %v1493 = vlaneseq
        %v1494 = vshrl.u32 %v1493, 7
        %v1495 = vsub.s32 0, %v1494
        %v1496 = vrot.slane %v1407, %v1495
        %v1497 = vlaneseq
        %v1498 = vshrl.u32 %v1497, 7
        %v1499 = vsub.s32 1, %v1498
        %v1500 = vrot.slane %v1407, %v1499
        %v1503 = vadd.f32 %v1484, %v1496
        %v1504 = vadd.f32 %v1485, %v1500
        %v1505 = vadd.f32 %v1486, %v1496
        %v1506 = vadd.f32 %v1487, %v1500
        %v1507 = vadd.f32 %v1488, %v1496
        %v1508 = vadd.f32 %v1489, %v1500
        %v1509 = vadd.f32 %v1490, %v1496
        %v1510 = vadd.f32 %v1491, %v1500
        %v1511 = vxor.u32 %v1503, 2147483648
        %v1512 = vxor.u32 %v1504, 2147483648
        %v1513 = vxor.u32 %v1505, 2147483648
        %v1514 = vxor.u32 %v1506, 2147483648
        %v1515 = vxor.u32 %v1507, 2147483648
        %v1516 = vxor.u32 %v1508, 2147483648
        %v1517 = vxor.u32 %v1509, 2147483648
        %v1518 = vxor.u32 %v1510, 2147483648
        %v1519 = vmul.f32 %v1511, 1.442695
        %v1520 = vpow.pop %v1519
        %v1521 = vmul.f32 %v1512, 1.442695
        %v1522 = vpow.pop %v1521
        %v1523 = vmul.f32 %v1513, 1.442695
        %v1524 = vpow.pop %v1523
        %v1525 = vmul.f32 %v1514, 1.442695
        %v1526 = vpow.pop %v1525
        %v1527 = vmul.f32 %v1515, 1.442695
        %v1528 = vpow.pop %v1527
        %v1529 = vmul.f32 %v1516, 1.442695
        %v1530 = vpow.pop %v1529
        %v1531 = vmul.f32 %v1517, 1.442695
        %v1532 = vpow.pop %v1531
        %v1533 = vmul.f32 %v1518, 1.442695
        %v1534 = vpow.pop %v1533
        %v1535 = vadd.f32 %v1520, 1.0
        %v1536 = vadd.f32 %v1522, 1.0
        %v1537 = vadd.f32 %v1524, 1.0
        %v1538 = vadd.f32 %v1526, 1.0
        %v1539 = vadd.f32 %v1528, 1.0
        %v1540 = vadd.f32 %v1530, 1.0
        %v1541 = vadd.f32 %v1532, 1.0
        %v1542 = vadd.f32 %v1534, 1.0
        %v1543 = vrcp.pop %v1535
        %v1544 = vmul.f32 1.0, %v1543
        %v1545 = vrcp.pop %v1536
        %v1546 = vmul.f32 1.0, %v1545
        %v1547 = vrcp.pop %v1537
        %v1548 = vmul.f32 1.0, %v1547
        %v1549 = vrcp.pop %v1538
        %v1550 = vmul.f32 1.0, %v1549
        %v1551 = vrcp.pop %v1539
        %v1552 = vmul.f32 1.0, %v1551
        %v1553 = vrcp.pop %v1540
        %v1554 = vmul.f32 1.0, %v1553
        %v1555 = vrcp.pop %v1541
        %v1556 = vmul.f32 1.0, %v1555
        %v1557 = vrcp.pop %v1542
        %v1558 = vmul.f32 1.0, %v1557
        %v1559 = vmul.f32 %v1503, %v1544
        %v1560 = vmul.f32 %v1504, %v1546
        %v1561 = vmul.f32 %v1505, %v1548
        %v1562 = vmul.f32 %v1506, %v1550
        %v1563 = vmul.f32 %v1507, %v1552
        %v1564 = vmul.f32 %v1508, %v1554
        %v1565 = vmul.f32 %v1509, %v1556
        %v1566 = vmul.f32 %v1510, %v1558
        %v1567 = vpack.c.bf16 %v1561, %v1559
        %v1568 = vpack.c.bf16 %v1562, %v1560
        %v1569 = vpack.c.bf16 %v519, %v518
        %v1570 = vpack.c.bf16 %v1565, %v1563
        %v1571 = vpack.c.bf16 %v1566, %v1564
        %v1572 = vpack.c.bf16 %v521, %v520
        %v1573 = vld [vmem:[#allocation10] sm:$0xf]
        %v1574 = vld [vmem:[#allocation10 + $0x4] sm:$0xf]
        %v1575 = vld [vmem:[#allocation10 + $0x8] sm:$0xf]
        %v1576 = vld [vmem:[#allocation10 + $0xc] sm:$0xf]
        %v1577 = vld [vmem:[#allocation10 + $0x10] sm:$0xf]
        %v1578 = vld [vmem:[#allocation10 + $0x14] sm:$0xf]
        %v1579 = vld [vmem:[#allocation10 + $0x18] sm:$0xf]
        %v1580 = vld [vmem:[#allocation10 + $0x1c] sm:$0xf]
        %v1581 = vld [vmem:[#allocation10 + $0x20] sm:$0xf]
        %v1582 = vld [vmem:[#allocation10 + $0x24] sm:$0xf]
        %v1583 = vld [vmem:[#allocation10 + $0x28] sm:$0xf]
        %v1584 = vld [vmem:[#allocation10 + $0x2c] sm:$0xf]
        %v1585 = vld [vmem:[#allocation10 + $0x30] sm:$0xf]
        %v1586 = vld [vmem:[#allocation10 + $0x34] sm:$0xf]
        %v1587 = vld [vmem:[#allocation10 + $0x38] sm:$0xf]
        %v1588 = vld [vmem:[#allocation10 + $0x3c] sm:$0xf]
        %v1589 = vld [vmem:[#allocation10 + $0x40] sm:$0xf]
        %v1590 = vld [vmem:[#allocation10 + $0x44] sm:$0xf]
        %v1591 = vld [vmem:[#allocation10 + $0x48] sm:$0xf]
        %v1592 = vld [vmem:[#allocation10 + $0x4c] sm:$0xf]
        %v1593 = vld [vmem:[#allocation10 + $0x50] sm:$0xf]
        %v1594 = vld [vmem:[#allocation10 + $0x54] sm:$0xf]
        %v1595 = vld [vmem:[#allocation10 + $0x58] sm:$0xf]
        %v1596 = vld [vmem:[#allocation10 + $0x5c] sm:$0xf]
        %v1597 = vld [vmem:[#allocation10 + $0x60] sm:$0xf]
        %v1598 = vld [vmem:[#allocation10 + $0x64] sm:$0xf]
        %v1599 = vld [vmem:[#allocation10 + $0x68] sm:$0xf]
        %v1600 = vld [vmem:[#allocation10 + $0x6c] sm:$0xf]
        %v1601 = vld [vmem:[#allocation10 + $0x70] sm:$0xf]
        %v1602 = vld [vmem:[#allocation10 + $0x74] sm:$0xf]
        %v1603 = vld [vmem:[#allocation10 + $0x78] sm:$0xf]
        %v1604 = vld [vmem:[#allocation10 + $0x7c] sm:$0xf]
        %v1605 = vld [vmem:[#allocation10 + $0x80] sm:$0xf]
        %v1606 = vld [vmem:[#allocation10 + $0x84] sm:$0xf]
        %v1607 = vld [vmem:[#allocation10 + $0x88] sm:$0xf]
        %v1608 = vld [vmem:[#allocation10 + $0x8c] sm:$0xf]
        %v1609 = vld [vmem:[#allocation10 + $0x90] sm:$0xf]
        %v1610 = vld [vmem:[#allocation10 + $0x94] sm:$0xf]
        %v1611 = vld [vmem:[#allocation10 + $0x98] sm:$0xf]
        %v1612 = vld [vmem:[#allocation10 + $0x9c] sm:$0xf]
        %v1613 = vld [vmem:[#allocation10 + $0xa0] sm:$0xf]
        %v1614 = vld [vmem:[#allocation10 + $0xa4] sm:$0xf]
        %v1615 = vld [vmem:[#allocation10 + $0xa8] sm:$0xf]
        %v1616 = vld [vmem:[#allocation10 + $0xac] sm:$0xf]
        %v1617 = vld [vmem:[#allocation10 + $0xb0] sm:$0xf]
        %v1618 = vld [vmem:[#allocation10 + $0xb4] sm:$0xf]
        %v1619 = vld [vmem:[#allocation10 + $0xb8] sm:$0xf]
        %v1620 = vld [vmem:[#allocation10 + $0xbc] sm:$0xf]
        %v1621 = vld [vmem:[%s10] sm:$0x1]
        %v1623 = vlaneseq
        %v1624 = vshrl.u32 %v1623, 7
        %v1625 = vsub.s32 0, %v1624
        %v1626 = vrot.slane %v1621, %v1625
        %v1676 = vunpack.c.l.b16 %v1573
        %v1677 = vunpack.c.l.b16 %v1574
        %v1678 = vunpack.c.l.b16 %v1575
        %v1679 = vunpack.c.l.b16 %v1576
        %v1680 = vunpack.c.l.b16 %v1577
        %v1681 = vunpack.c.l.b16 %v1578
        %v1682 = vunpack.c.l.b16 %v1579
        %v1683 = vunpack.c.l.b16 %v1580
        %v1684 = vunpack.c.l.b16 %v1581
        %v1685 = vunpack.c.l.b16 %v1582
        %v1686 = vunpack.c.l.b16 %v1583
        %v1687 = vunpack.c.l.b16 %v1584
        %v1688 = vunpack.c.l.b16 %v1585
        %v1689 = vunpack.c.l.b16 %v1586
        %v1690 = vunpack.c.l.b16 %v1587
        %v1691 = vunpack.c.l.b16 %v1588
        %v1692 = vunpack.c.l.b16 %v1589
        %v1693 = vunpack.c.l.b16 %v1590
        %v1694 = vunpack.c.l.b16 %v1591
        %v1695 = vunpack.c.l.b16 %v1592
        %v1696 = vunpack.c.l.b16 %v1593
        %v1697 = vunpack.c.l.b16 %v1594
        %v1698 = vunpack.c.l.b16 %v1595
        %v1699 = vunpack.c.l.b16 %v1596
        %v1700 = vunpack.c.l.b16 %v1597
        %v1701 = vunpack.c.l.b16 %v1598
        %v1702 = vunpack.c.l.b16 %v1599
        %v1703 = vunpack.c.l.b16 %v1600
        %v1704 = vunpack.c.l.b16 %v1601
        %v1705 = vunpack.c.l.b16 %v1602
        %v1706 = vunpack.c.l.b16 %v1603
        %v1707 = vunpack.c.l.b16 %v1604
        %v1708 = vunpack.c.l.b16 %v1605
        %v1709 = vunpack.c.l.b16 %v1606
        %v1710 = vunpack.c.l.b16 %v1607
        %v1711 = vunpack.c.l.b16 %v1608
        %v1712 = vunpack.c.l.b16 %v1609
        %v1713 = vunpack.c.l.b16 %v1610
        %v1714 = vunpack.c.l.b16 %v1611
        %v1715 = vunpack.c.l.b16 %v1612
        %v1716 = vunpack.c.l.b16 %v1613
        %v1717 = vunpack.c.l.b16 %v1614
        %v1718 = vunpack.c.l.b16 %v1615
        %v1719 = vunpack.c.l.b16 %v1616
        %v1720 = vunpack.c.l.b16 %v1617
        %v1721 = vunpack.c.l.b16 %v1618
        %v1722 = vunpack.c.l.b16 %v1619
        %v1723 = vunpack.c.l.b16 %v1620
        %v1724 = vpack.c.b16 %v1677, %v1676
        %v1725 = vpack.c.b16 %v1679, %v1678
        %v1726 = vpack.c.b16 %v1681, %v1680
        %v1727 = vpack.c.b16 %v1683, %v1682
        %v1728 = vpack.c.b16 %v1685, %v1684
        %v1729 = vpack.c.b16 %v1687, %v1686
        %v1730 = vpack.c.b16 %v1689, %v1688
        %v1731 = vpack.c.b16 %v1691, %v1690
        %v1732 = vpack.c.b16 %v1693, %v1692
        %v1733 = vpack.c.b16 %v1695, %v1694
        %v1734 = vpack.c.b16 %v1697, %v1696
        %v1735 = vpack.c.b16 %v1699, %v1698
        %v1736 = vpack.c.b16 %v1701, %v1700
        %v1737 = vpack.c.b16 %v1703, %v1702
        %v1738 = vpack.c.b16 %v1705, %v1704
        %v1739 = vpack.c.b16 %v1707, %v1706
        %v1740 = vpack.c.b16 %v1709, %v1708
        %v1741 = vpack.c.b16 %v1711, %v1710
        %v1742 = vpack.c.b16 %v1713, %v1712
        %v1743 = vpack.c.b16 %v1715, %v1714
        %v1744 = vpack.c.b16 %v1717, %v1716
        %v1745 = vpack.c.b16 %v1719, %v1718
        %v1746 = vpack.c.b16 %v1721, %v1720
        %v1747 = vpack.c.b16 %v1723, %v1722
        %1772 = vmatprep.subr.bf16.mxu0 0
        %1773 = vmatpush1.bf16.msra.mxu0 %v1724
        %1774 = vmatprep.subr.bf16.mxu0 0
        %1775 = vmatpush1.bf16.msra.mxu0 %v1725
        %1776 = vmatprep.subr.bf16.mxu0 0
        %1777 = vmatpush1.bf16.msra.mxu0 %v1726
        %1778 = vmatprep.subr.bf16.mxu0 0
        %1779 = vmatpush1.bf16.msra.mxu0 %v1727
        %1780 = vmatprep.subr.bf16.mxu0 0
        %1781 = vmatpush1.bf16.msra.mxu0 %v1728
        %1782 = vmatprep.subr.bf16.mxu0 0
        %1783 = vmatpush1.bf16.msra.mxu0 %v1729
        %1784 = vmatprep.subr.bf16.mxu0 0
        %1785 = vmatpush1.bf16.msra.mxu0 %v1730
        %1786 = vmatprep.subr.bf16.mxu0 0
        %1787 = vmatpush1.bf16.msra.mxu0 %v1731
        %1788 = vmatprep.subr.bf16.mxu0 0
        %1789 = vmatpush1.bf16.msra.mxu0 %v1732
        %1790 = vmatprep.subr.bf16.mxu0 0
        %1791 = vmatpush1.bf16.msra.mxu0 %v1733
        %1792 = vmatprep.subr.bf16.mxu0 0
        %1793 = vmatpush1.bf16.msra.mxu0 %v1734
        %1794 = vmatprep.subr.bf16.mxu0 0
        %1795 = vmatpush1.bf16.msra.mxu0 %v1735
        %1796 = vmatprep.subr.bf16.mxu0 0
        %1797 = vmatpush1.bf16.msra.mxu0 %v1736
        %1798 = vmatprep.subr.bf16.mxu0 0
        %1799 = vmatpush1.bf16.msra.mxu0 %v1737
        %1800 = vmatprep.subr.bf16.mxu0 0
        %1801 = vmatpush1.bf16.msra.mxu0 %v1738
        %1802 = vmatprep.subr.bf16.mxu0 0
        %1803 = vmatpush1.bf16.msra.mxu0 %v1739
        %1804 = vmatprep.mubr.bf16.mxu0 %v1568
        %1805 = vmatmul.mubr.bf16.gmra.mrb[0].mxu0 %v1567
        %v1806 = vpop.f32.mrb[0].mxu0
        %v1807 = vadd.f32 %v1626, %v1806
        %v1808 = vpop.f32.mrb[0].mxu0
        %v1809 = vpop.f32.mrb[0].mxu0
        %v1810 = vadd.f32 %v1626, %v1809
        %v1811 = vpop.f32.mrb[0].mxu0
        %1812 = vmatprep.mubr.bf16.mxu0 %v1571
        %1813 = vmatmul.mubr.bf16.gmra.mrb[0].mxu0 %v1570
        %v1814 = vpop.f32.mrb[0].mxu0
        %v1815 = vadd.f32 %v1626, %v1814
        %v1816 = vpop.f32.mrb[0].mxu0
        %v1817 = vpop.f32.mrb[0].mxu0
        %v1818 = vadd.f32 %v1626, %v1817
        %v1819 = vpop.f32.mrb[0].mxu0
        %1820 = vdwg.mxu0
        %1821 = vmatprep.subr.bf16.mxu0 0
        %1822 = vmatpush1.bf16.msra.mxu0 %v1740
        %1823 = vmatprep.subr.bf16.mxu0 0
        %1824 = vmatpush1.bf16.msra.mxu0 %v1741
        %1825 = vmatprep.subr.bf16.mxu0 0
        %1826 = vmatpush1.bf16.msra.mxu0 %v1742
        %1827 = vmatprep.subr.bf16.mxu0 0
        %1828 = vmatpush1.bf16.msra.mxu0 %v1743
        %1829 = vmatprep.subr.bf16.mxu0 0
        %1830 = vmatpush1.bf16.msra.mxu0 %v1744
        %1831 = vmatprep.subr.bf16.mxu0 0
        %1832 = vmatpush1.bf16.msra.mxu0 %v1745
        %1833 = vmatprep.subr.bf16.mxu0 0
        %1834 = vmatpush1.bf16.msra.mxu0 %v1746
        %1835 = vmatprep.subr.bf16.mxu0 0
        %1836 = vmatpush1.bf16.msra.mxu0 %v1747
        %1837 = vmatprep.subr.bf16.mxu0 0
        %1838 = vmatpush1.bf16.msra.mxu0 0
        %1839 = vmatprep.subr.bf16.mxu0 0
        %1840 = vmatpush1.bf16.msra.mxu0 0
        %1841 = vmatprep.subr.bf16.mxu0 0
        %1842 = vmatpush1.bf16.msra.mxu0 0
        %1843 = vmatprep.subr.bf16.mxu0 0
        %1844 = vmatpush1.bf16.msra.mxu0 0
        %1845 = vmatprep.subr.bf16.mxu0 0
        %1846 = vmatpush1.bf16.msra.mxu0 0
        %1847 = vmatprep.subr.bf16.mxu0 0
        %1848 = vmatpush1.bf16.msra.mxu0 0
        %1849 = vmatprep.subr.bf16.mxu0 0
        %1850 = vmatpush1.bf16.msra.mxu0 0
        %1851 = vmatprep.subr.bf16.mxu0 0
        %1852 = vmatpush1.bf16.msra.mxu0 0
        %1853 = vmatprep.mubr.bf16.mxu0 0
        %1854 = vmatmul.mubr.bf16.gmra.mrb[0].mxu0 %v1569
        %v1855 = vpop.f32.mrb[0].mxu0
        %v1856 = vadd.f32 %v1807, %v1855
        %v1857 = vpop.f32.mrb[0].mxu0
        %v1858 = vpop.f32.mrb[0].mxu0
        %v1859 = vadd.f32 %v1810, %v1858
        %v1860 = vpop.f32.mrb[0].mxu0
        %1861 = vmatprep.mubr.bf16.mxu0 0
        %1862 = vmatmul.mubr.bf16.gmra.mrb[0].mxu0 %v1572
        %v1863 = vpop.f32.mrb[0].mxu0
        %v1864 = vadd.f32 %v1815, %v1863
        %v1865 = vpop.f32.mrb[0].mxu0
        %v1866 = vpop.f32.mrb[0].mxu0
        %v1867 = vadd.f32 %v1818, %v1866
        %v1868 = vpop.f32.mrb[0].mxu0
        %1869 = vdwg.mxu0
        %1870 = vst [vmem:[%s512] sm:$0xff] %v1856
        %1871 = vst [vmem:[%s512 + $0x8] sm:$0xff] %v1859
        %1872 = vst [vmem:[%s512 + $0x10] sm:$0xff] %v1864
        %1873 = vst [vmem:[%s512 + $0x18] sm:$0xff] %v1867
        %s1874 = sand.u32 %s286, 1
        %s1875 = scalar_lea.sflag [#allocation4], %s1874
        %s1876 = sand.u32 %s286, 1
        %s1877 = smul.addr %s1876, 32
        %s1878 = scalar_lea.vmem [#allocation11], %s1877
        // Predicated region
        $region85: #{tpu_custom_call.1} parent=63 // pred_check
          %p1879 = pneg %p296
        $region86: #{tpu_custom_call.1} parent=63 // pred_check_branch
          %1881 = sbr.rel (%p1879) target = $region88
        $region87: #{tpu_custom_call.1} parent=63 // pred_region
          %s1882 = smul.u32 4, %s32
          %s1884 = ssub.s32 512, 512
          %1885 = vsyncadd %s1875, %s1884
          %s1886 = smul.addr %s1882, 128
          %s1887 = scalar_lea.hbm %s11, %s1886
          %s1888 = sshll.u32 %s1878, 4
          %s1889 = int_to_ptr.vmem [resolvable:$true] %s1888
          %1894 = dma.vmem_to_hbm [thread:$0]  %s1889, 512, %s1887, %s1875, 128, 128, 8
        $region88: #{tpu_custom_call.1} parent=63 // pred_fallthru
          _
      $region64: #{tpu_custom_call.1} parent=5 // pred_fallthru
        _
      %p1895 = scmp.le.s32.totalorder 2, %s27
      // Predicated region
      $region89: #{tpu_custom_call.1} parent=5 // pred_check
        %p1896 = pneg %p1895
      $region90: #{tpu_custom_call.1} parent=5 // pred_check_branch
        %1898 = sbr.rel (%p1896) target = $region92
      $region91: #{tpu_custom_call.1} parent=5 // pred_region
        %s1899 = ssub.s32 %s27, 2
        // Predicated region
        $region93: #{tpu_custom_call.1} parent=91 // pred_check
          %p1900 = pneg %p302
        $region94: #{tpu_custom_call.1} parent=91 // pred_check_branch
          %1902 = sbr.rel (%p1900) target = $region96
        $region95: #{tpu_custom_call.1} parent=91 // pred_region
          %s1903 = sand.u32 %s287, 1
          %s1904 = scalar_lea.sflag [#allocation4], %s1903
          %s1905 = sand.u32 %s287, 1
          %s1906 = smul.addr %s1905, 32
          %s1907 = scalar_lea.vmem [#allocation11], %s1906
          %1908 = dma.done %s1904, 512
        $region96: #{tpu_custom_call.1} parent=91 // pred_fallthru
          _
      $region92: #{tpu_custom_call.1} parent=5 // pred_fallthru
        _
    $region6: #{tpu_custom_call.1} parent=1 // loop_footer
      %s31 = sadd.s32 1, %s27
    $region7: #{tpu_custom_call.1} parent=1 // loop_footer_branch
      %26 = sbr.rel target = $region3
    $region8: #{tpu_custom_call.1} parent=1 // loop_exit
      _
    %1909 = vsyncpa [#allocation3], 1
    %s1910 = scalar_lea.sflag [#allocation3], 1
    %1911 = vsyncpa %s1910, 1
    %1912 = vsyncpa [#allocation6], 1
    %s1913 = scalar_lea.sflag [#allocation6], 1
    %1914 = vsyncpa %s1913, 1
    %1915 = vsyncpa [#allocation9], 1
    %1916 = vsyncpa [#allocation4], 1
    %s1917 = scalar_lea.sflag [#allocation4], 1
    %1918 = vsyncpa %s1917, 1

</llo_original>
